<compile_context>
chip_gen: v6e
topology: v6e:2x2x1
jax: 0.10.0
libtpu: 0.0.40
codegen_flags: <defaults>
</compile_context>

<pallas_src>
import functools

import jax
import jax.numpy as jnp
from jax.experimental import pallas as pl
from jax.experimental.pallas import tpu as pltpu

LANE = 128          # lane width of every packed weight / activation slab
TILE_B = 128        # batch rows per grid step (multiple of 8)


def _round_up(x, m):
    return (x + m - 1) // m * m


# ---------------------------------------------------------------------------
# Pallas kernel: fused 6-layer MLP chain (matmul + bias + ReLU)
# ---------------------------------------------------------------------------
def _mlp_chain_kernel(x_ref, w_ref, b_ref, o_ref, *, num_layers):
    # x_ref : (TILE_B, K0)               input tile (K0 = padded input_dim)
    # w_ref : (num_layers, LANE, LANE)   zero-padded weight slab
    # b_ref : (num_layers, LANE)         zero-padded bias slab
    # o_ref : (TILE_B, LANE)             lane-dense output tile
    h = x_ref[...].astype(jnp.float32)
    k0 = h.shape[-1]
    b_all = b_ref[...].astype(jnp.float32)            # (num_layers, LANE)

    for i in range(num_layers):                       # statically unrolled
        w_full = w_ref[i]                             # (LANE, LANE)
        w = w_full[:k0, :] if i == 0 else w_full      # first layer: K0 rows
        b = b_all[i:i + 1, :]                         # (1, LANE)
        h = jnp.maximum(
            jnp.dot(h, w, preferred_element_type=jnp.float32) + b, 0.0
        )
    o_ref[...] = h.astype(o_ref.dtype)


# ---------------------------------------------------------------------------
# Wrapper: pack folded params into slabs, launch the batched kernel
# ---------------------------------------------------------------------------
def local_notion_forward(x, folded_params, *, tile_b=TILE_B):
    """x: (B, input_dim) or (input_dim,) f32.
    folded_params: list of (W[in, out], b[out]) for the 6 folded layers."""
    x = jnp.asarray(x, jnp.float32)
    squeeze = x.ndim == 1
    if squeeze:
        x = x[None, :]
    B, input_dim = x.shape

    num_layers = len(folded_params)
    out_dim = folded_params[-1][0].shape[1]

    # Pack all layer weights / biases into single zero-padded slabs.
    w_slab = jnp.zeros((num_layers, LANE, LANE), jnp.float32)
    b_slab = jnp.zeros((num_layers, LANE), jnp.float32)
    for i, (W, b) in enumerate(folded_params):
        K, N = W.shape
        assert K <= LANE and N <= LANE, "layer width exceeds packed lane width"
        w_slab = w_slab.at[i, :K, :N].set(W.astype(jnp.float32))
        b_slab = b_slab.at[i, :N].set(b.astype(jnp.float32))

    # Pad batch rows to a multiple of tile_b and features to a multiple of 8.
    k0 = _round_up(input_dim, 8)
    b_pad = _round_up(B, tile_b)
    xp = jnp.pad(x, ((0, b_pad - B), (0, k0 - input_dim)))   # no-op in demo

    grid = (b_pad // tile_b,)
    kernel = functools.partial(_mlp_chain_kernel, num_layers=num_layers)

    out = pl.pallas_call(
        kernel,
        out_shape=jax.ShapeDtypeStruct((b_pad, LANE), jnp.float32),
        grid=grid,
        in_specs=[
            pl.BlockSpec((tile_b, k0), lambda i: (i, 0)),
            pl.BlockSpec((num_layers, LANE, LANE), lambda i: (0, 0, 0)),
            pl.BlockSpec((num_layers, LANE), lambda i: (0, 0)),
        ],
        out_specs=pl.BlockSpec((tile_b, LANE), lambda i: (i, 0)),
        compiler_params=pltpu.CompilerParams(
            dimension_semantics=("parallel",)),
    )(xp, w_slab, b_slab)

    y = out[:B, :out_dim]                                    # lane-dense -> slice
    return y[0] if squeeze else y


# ---------------------------------------------------------------------------
# Deterministic parameter construction (PyTorch Linear-style uniform init)
# ---------------------------------------------------------------------------
def _linear_init(key, fan_in, fan_out):
    kw, kb = jax.random.split(key)
    bound = 1.0 / (fan_in ** 0.5)
    # Stored as (in, out) so the kernel computes x @ W + b (== PyTorch x W^T + b).
    W = jax.random.uniform(kw, (fan_in, fan_out), jnp.float32, -bound, bound)
    b = jax.random.uniform(kb, (fan_out,), jnp.float32, -bound, bound)
    return W, b


def build_params(key, input_dim, output_dim):
    nb = input_dim // 2
    keys = jax.random.split(key, 2 * nb + 4)

    block_params = []
    for bidx in range(nb):
        w1, b1 = _linear_init(keys[2 * bidx], 2, 2)      # Block: Linear(2, 2)
        w2, b2 = _linear_init(keys[2 * bidx + 1], 2, 4)  # Block: Linear(2, 4)
        block_params.append((w1, b1, w2, b2))

    f1, f2, f3 = 32, 16, 16
    net_params = [
        _linear_init(keys[2 * nb + 0], 4 * nb, f1),
        _linear_init(keys[2 * nb + 1], f1, f2),
        _linear_init(keys[2 * nb + 2], f2, f3),
        _linear_init(keys[2 * nb + 3], f3, output_dim),
    ]
    return block_params, net_params


def fold_params(block_params, net_params, input_dim):
    """Fold per-block linears into block-diagonal matrices (exact)."""
    nb = input_dim // 2
    W1_bd = jnp.zeros((input_dim, input_dim), jnp.float32)
    b1_cat = jnp.zeros((input_dim,), jnp.float32)
    W2_bd = jnp.zeros((input_dim, 4 * nb), jnp.float32)
    b2_cat = jnp.zeros((4 * nb,), jnp.float32)
    for bidx, (w1, b1, w2, b2) in enumerate(block_params):
        r = slice(2 * bidx, 2 * bidx + 2)
        W1_bd = W1_bd.at[r, r].set(w1)
        b1_cat = b1_cat.at[r].set(b1)
        W2_bd = W2_bd.at[r, 4 * bidx:4 * bidx + 4].set(w2)
        b2_cat = b2_cat.at[4 * bidx:4 * bidx + 4].set(b2)
    return [(W1_bd, b1_cat), (W2_bd, b2_cat)] + list(net_params)


# ---------------------------------------------------------------------------
# Pure-JAX reference mirroring the PyTorch forward (slice-per-block + cat)
# ---------------------------------------------------------------------------
def reference_forward(x, block_params, net_params):
    outs = []
    for bidx, (w1, b1, w2, b2) in enumerate(block_params):
        xb = x[..., 2 * bidx:2 * bidx + 2]
        h = jnp.maximum(xb @ w1 + b1, 0.0)
        z = jnp.maximum(h @ w2 + b2, 0.0)
        outs.append(z)
    z = jnp.concatenate(outs, axis=-1)
    for W, b in net_params:
        z = jnp.maximum(z @ W + b, 0.0)     # final nn.ReLU present in the module
    return z


if __name__ == "__main__":
    input_dim, output_dim = 8, 4            # 4 Blocks, matching LocalNotion(8, 4)
    batch = 256                             # batched inputs amortize launch cost
    key = jax.random.PRNGKey(0)
    kx, kp = jax.random.split(key)

    x = jax.random.normal(kx, (batch, input_dim), jnp.float32)
    block_params, net_params = build_params(kp, input_dim, output_dim)
    folded = fold_params(block_params, net_params, input_dim)

    # Batched kernel run.
    y = jax.block_until_ready(local_notion_forward(x, folded))
    y_ref = reference_forward(x, block_params, net_params)
    assert y.shape == (batch, output_dim)
    assert jnp.allclose(y, y_ref, atol=1e-5, rtol=1e-5)

    # Single-vector path (matches the PyTorch module's 1-D forward signature).
    y1 = jax.block_until_ready(local_notion_forward(x[0], folded))
    assert y1.shape == (output_dim,)
    assert jnp.allclose(y1, y_ref[0], atol=1e-5, rtol=1e-5)

    print("KERNEL_OK")
</pallas_src>

<mosaic_0001>
module attributes {stable_mosaic.version = 11 : i64} {
  func.func @_mlp_chain_kernel(%arg0: i32, %arg1: memref<128x8xf32, #tpu.memory_space<vmem>>, %arg2: memref<6x128x128xf32, #tpu.memory_space<vmem>>, %arg3: memref<6x128xf32, #tpu.memory_space<vmem>>, %arg4: memref<128x128xf32, #tpu.memory_space<vmem>>) attributes {dimension_semantics = [#tpu.dimension_semantics<parallel>], iteration_bounds = array<i64: 2>, scalar_prefetch = 0 : i64, scratch_operands = 0 : i64, tpu.core_type = #tpu.core_type<tc>, window_params = [{transform_indices = @transform_0, window_bounds = array<i64: 128, 8>}, {pipeline_mode = #tpu.pipeline_mode<synchronous>, transform_indices = @transform_1, window_bounds = array<i64: 6, 128, 128>}, {pipeline_mode = #tpu.pipeline_mode<synchronous>, transform_indices = @transform_2, window_bounds = array<i64: 6, 128>}, {transform_indices = @transform_3, window_bounds = array<i64: 128, 128>}]} {
    %c0 = arith.constant 0 : index
    %c0_0 = arith.constant 0 : index
    %0 = vector.load %arg1[%c0, %c0_0] : memref<128x8xf32, #tpu.memory_space<vmem>>, vector<128x8xf32>
    %c0_1 = arith.constant 0 : index
    %c0_2 = arith.constant 0 : index
    %1 = vector.load %arg3[%c0_1, %c0_2] : memref<6x128xf32, #tpu.memory_space<vmem>>, vector<6x128xf32>
    %c0_3 = arith.constant 0 : index
    %c0_4 = arith.constant 0 : index
    %c0_5 = arith.constant 0 : index
    %2 = vector.load %arg2[%c0_3, %c0_4, %c0_5] : memref<6x128x128xf32, #tpu.memory_space<vmem>>, vector<1x128x128xf32>
    %3 = vector.shape_cast %2 : vector<1x128x128xf32> to vector<128x128xf32>
    %4 = vector.extract_strided_slice %3 {offsets = [0, 0], sizes = [8, 128], strides = [1, 1]} : vector<128x128xf32> to vector<8x128xf32>
    %5 = vector.extract_strided_slice %1 {offsets = [0, 0], sizes = [1, 128], strides = [1, 1]} : vector<6x128xf32> to vector<1x128xf32>
    %cst = arith.constant dense<0.000000e+00> : vector<128x128xf32>
    %6 = tpu.matmul %0, %4, %cst {dimension_numbers = #tpu.dot_dimension_numbers<[1], [0], [0], [1], [0, 0, 1, 1], [], []>} : vector<128x8xf32>, vector<8x128xf32>, vector<128x128xf32> -> vector<128x128xf32>
    %7 = vector.broadcast %5 : vector<1x128xf32> to vector<128x128xf32>
    %8 = arith.addf %6, %7 : vector<128x128xf32>
    %cst_6 = arith.constant 0.000000e+00 : f32
    %9 = vector.broadcast %cst_6 : f32 to vector<128x128xf32>
    %10 = arith.maximumf %8, %9 : vector<128x128xf32>
    %c1 = arith.constant 1 : index
    %c0_7 = arith.constant 0 : index
    %c0_8 = arith.constant 0 : index
    %11 = vector.load %arg2[%c1, %c0_7, %c0_8] : memref<6x128x128xf32, #tpu.memory_space<vmem>>, vector<1x128x128xf32>
    %12 = vector.shape_cast %11 : vector<1x128x128xf32> to vector<128x128xf32>
    %13 = vector.extract_strided_slice %1 {offsets = [1, 0], sizes = [1, 128], strides = [1, 1]} : vector<6x128xf32> to vector<1x128xf32>
    %cst_9 = arith.constant dense<0.000000e+00> : vector<128x128xf32>
    %14 = tpu.matmul %10, %12, %cst_9 {dimension_numbers = #tpu.dot_dimension_numbers<[1], [0], [0], [1], [0, 0, 1, 1], [], []>} : vector<128x128xf32>, vector<128x128xf32>, vector<128x128xf32> -> vector<128x128xf32>
    %15 = vector.broadcast %13 : vector<1x128xf32> to vector<128x128xf32>
    %16 = arith.addf %14, %15 : vector<128x128xf32>
    %cst_10 = arith.constant 0.000000e+00 : f32
    %17 = vector.broadcast %cst_10 : f32 to vector<128x128xf32>
    %18 = arith.maximumf %16, %17 : vector<128x128xf32>
    %c2 = arith.constant 2 : index
    %c0_11 = arith.constant 0 : index
    %c0_12 = arith.constant 0 : index
    %19 = vector.load %arg2[%c2, %c0_11, %c0_12] : memref<6x128x128xf32, #tpu.memory_space<vmem>>, vector<1x128x128xf32>
    %20 = vector.shape_cast %19 : vector<1x128x128xf32> to vector<128x128xf32>
    %21 = vector.extract_strided_slice %1 {offsets = [2, 0], sizes = [1, 128], strides = [1, 1]} : vector<6x128xf32> to vector<1x128xf32>
    %cst_13 = arith.constant dense<0.000000e+00> : vector<128x128xf32>
    %22 = tpu.matmul %18, %20, %cst_13 {dimension_numbers = #tpu.dot_dimension_numbers<[1], [0], [0], [1], [0, 0, 1, 1], [], []>} : vector<128x128xf32>, vector<128x128xf32>, vector<128x128xf32> -> vector<128x128xf32>
    %23 = vector.broadcast %21 : vector<1x128xf32> to vector<128x128xf32>
    %24 = arith.addf %22, %23 : vector<128x128xf32>
    %cst_14 = arith.constant 0.000000e+00 : f32
    %25 = vector.broadcast %cst_14 : f32 to vector<128x128xf32>
    %26 = arith.maximumf %24, %25 : vector<128x128xf32>
    %c3 = arith.constant 3 : index
    %c0_15 = arith.constant 0 : index
    %c0_16 = arith.constant 0 : index
    %27 = vector.load %arg2[%c3, %c0_15, %c0_16] : memref<6x128x128xf32, #tpu.memory_space<vmem>>, vector<1x128x128xf32>
    %28 = vector.shape_cast %27 : vector<1x128x128xf32> to vector<128x128xf32>
    %29 = vector.extract_strided_slice %1 {offsets = [3, 0], sizes = [1, 128], strides = [1, 1]} : vector<6x128xf32> to vector<1x128xf32>
    %cst_17 = arith.constant dense<0.000000e+00> : vector<128x128xf32>
    %30 = tpu.matmul %26, %28, %cst_17 {dimension_numbers = #tpu.dot_dimension_numbers<[1], [0], [0], [1], [0, 0, 1, 1], [], []>} : vector<128x128xf32>, vector<128x128xf32>, vector<128x128xf32> -> vector<128x128xf32>
    %31 = vector.broadcast %29 : vector<1x128xf32> to vector<128x128xf32>
    %32 = arith.addf %30, %31 : vector<128x128xf32>
    %cst_18 = arith.constant 0.000000e+00 : f32
    %33 = vector.broadcast %cst_18 : f32 to vector<128x128xf32>
    %34 = arith.maximumf %32, %33 : vector<128x128xf32>
    %c4 = arith.constant 4 : index
    %c0_19 = arith.constant 0 : index
    %c0_20 = arith.constant 0 : index
    %35 = vector.load %arg2[%c4, %c0_19, %c0_20] : memref<6x128x128xf32, #tpu.memory_space<vmem>>, vector<1x128x128xf32>
    %36 = vector.shape_cast %35 : vector<1x128x128xf32> to vector<128x128xf32>
    %37 = vector.extract_strided_slice %1 {offsets = [4, 0], sizes = [1, 128], strides = [1, 1]} : vector<6x128xf32> to vector<1x128xf32>
    %cst_21 = arith.constant dense<0.000000e+00> : vector<128x128xf32>
    %38 = tpu.matmul %34, %36, %cst_21 {dimension_numbers = #tpu.dot_dimension_numbers<[1], [0], [0], [1], [0, 0, 1, 1], [], []>} : vector<128x128xf32>, vector<128x128xf32>, vector<128x128xf32> -> vector<128x128xf32>
    %39 = vector.broadcast %37 : vector<1x128xf32> to vector<128x128xf32>
    %40 = arith.addf %38, %39 : vector<128x128xf32>
    %cst_22 = arith.constant 0.000000e+00 : f32
    %41 = vector.broadcast %cst_22 : f32 to vector<128x128xf32>
    %42 = arith.maximumf %40, %41 : vector<128x128xf32>
    %c5 = arith.constant 5 : index
    %c0_23 = arith.constant 0 : index
    %c0_24 = arith.constant 0 : index
    %43 = vector.load %arg2[%c5, %c0_23, %c0_24] : memref<6x128x128xf32, #tpu.memory_space<vmem>>, vector<1x128x128xf32>
    %44 = vector.shape_cast %43 : vector<1x128x128xf32> to vector<128x128xf32>
    %45 = vector.extract_strided_slice %1 {offsets = [5, 0], sizes = [1, 128], strides = [1, 1]} : vector<6x128xf32> to vector<1x128xf32>
    %cst_25 = arith.constant dense<0.000000e+00> : vector<128x128xf32>
    %46 = tpu.matmul %42, %44, %cst_25 {dimension_numbers = #tpu.dot_dimension_numbers<[1], [0], [0], [1], [0, 0, 1, 1], [], []>} : vector<128x128xf32>, vector<128x128xf32>, vector<128x128xf32> -> vector<128x128xf32>
    %47 = vector.broadcast %45 : vector<1x128xf32> to vector<128x128xf32>
    %48 = arith.addf %46, %47 : vector<128x128xf32>
    %cst_26 = arith.constant 0.000000e+00 : f32
    %49 = vector.broadcast %cst_26 : f32 to vector<128x128xf32>
    %50 = arith.maximumf %48, %49 : vector<128x128xf32>
    %c0_27 = arith.constant 0 : index
    %c0_28 = arith.constant 0 : index
    %51 = vector.load %arg4[%c0_27, %c0_28] : memref<128x128xf32, #tpu.memory_space<vmem>>, vector<128x128xf32>
    tpu.vector_store %arg4[%c0_27, %c0_28], %50 {strides = array<i32>} : memref<128x128xf32, #tpu.memory_space<vmem>>, vector<128x128xf32>,
    return
  }
  func.func @transform_0(%arg0: i32) -> (i32, i32) {
    %c0_i32 = arith.constant 0 : i32
    %c0_i32_0 = arith.constant 0 : i32
    return %arg0, %c0_i32 : i32, i32
  }
  func.func @transform_1(%arg0: i32) -> (i32, i32, i32) {
    %c0_i32 = arith.constant 0 : i32
    %c0_i32_0 = arith.constant 0 : i32
    %c0_i32_1 = arith.constant 0 : i32
    %c0_i32_2 = arith.constant 0 : i32
    return %c0_i32, %c0_i32_0, %c0_i32_1 : i32, i32, i32
  }
  func.func @transform_2(%arg0: i32) -> (i32, i32) {
    %c0_i32 = arith.constant 0 : i32
    %c0_i32_0 = arith.constant 0 : i32
    %c0_i32_1 = arith.constant 0 : i32
    return %c0_i32, %c0_i32_0 : i32, i32
  }
  func.func @transform_3(%arg0: i32) -> (i32, i32) {
    %c0_i32 = arith.constant 0 : i32
    %c0_i32_0 = arith.constant 0 : i32
    return %arg0, %c0_i32 : i32, i32
  }
}

</mosaic_0001>

<llo_original>
// kernel: tpu_custom_call.1
$region0: #{tpu_custom_call.1}
  #allocation0 [shape = 'u32[]', space=smem, size = 0x4, offset = 0x4, fixed_abs, tag = 'smem constant byte address 0x4 - core index']
  #allocation1 [shape = 'u32[144,128]{1,0:T(1,128)}', space=vmem, size = 0x12000, scoped, tag = 'internal scratch']
  %s0 = inlined_call_operand.vmem [shape: f32[256,8], index: 0, kind: input, shape index: {}]
  %s1 = inlined_call_operand.hbm [shape: f32[6,128,128], index: 1, kind: input, shape index: {}]
  %s2 = inlined_call_operand.vmem [shape: f32[6,128], index: 2, kind: input, shape index: {}]
  %s3 = inlined_call_operand.hbm [shape: f32[256,128], index: 3, kind: output, shape index: {}]
  %s4 = sld [smem:[#allocation0]]
  $region49: #{tpu_custom_call.1} parent=0
    _
  %s6 = ssub.s32 1, %s4
  %s7 = scalar_select 0, %s6, %s4
  $region1: #{tpu_custom_call.1} parent=0
    #allocation2 [shape = 'u8[393216]{0}', space=vmem, size = 0x60000, scoped, tag = 'input window, operand 1, single buffered']
    #allocation3 [shape = 's32[2]{0}', space=sflag, size = 0x8, scoped, tag = 'scoped memory for tpu_custom_call.1']
    #allocation4 [shape = 's32[2]{0}', space=sflag, size = 0x8, scoped, tag = 'scoped memory for tpu_custom_call.1']
    #allocation5 [shape = 'u8[131072]{0}', space=vmem, size = 0x20000, scoped, tag = 'output window, operand 0']
    %8 = vsyncpa [#allocation3], 0
    %9 = vsyncpa [#allocation4], 0
    %s10 = scalar_lea.sflag [#allocation4], 1
    %11 = vsyncpa %s10, 0
    loop: start=0, step=1, limit=4
    $region2: #{tpu_custom_call.1} parent=1 // loop_pre_header
      _
    $region3: #{tpu_custom_call.1} parent=1 // loop_header
      %s13 = sphi 0, %s17
      %p14 = scmp.ge.s32.totalorder %s13, 4
      %s23 = sphi 0, %s25
      %s26 = sphi 0, %s23
      %s27 = sphi 0, %s26
      %s43 = sphi 0, %s27
      %s47 = sphi 0, %s47
      %s49 = sphi 0, %s47
      %s50 = sphi 0, %s49
      %s64 = sphi 0, %s50
      %s68 = sphi 0, %s68
      %s70 = sphi 0, %s68
      %s71 = sphi 0, %s70
      %s85 = sphi 0, %s71
      %s91 = sphi 0, %s93
      %s94 = sphi 0, %s91
      %s95 = sphi 0, %s94
      %s111 = sphi 0, %s95
    $region4: #{tpu_custom_call.1} parent=1 // loop_header_branch
      %16 = sbr.rel (%p14) target = $region8
    $region5: #{tpu_custom_call.1} parent=1 // loop_body
      %s18 = ssub.s32 %s13, 1
      %s19 = ssub.s32 %s13, 2
      %s20 = sadd.s32 %s13, 1
      %s21 = ssub.s32 %s13, %s20
      %p22 = scmp.eq.s32.totalorder %s21, 0
      %s24 = sadd.s32 %s23, 1
      %s25 = scalar_select %p22, %s23, %s24
      %p28 = pneg %p22
      %p29 = scmp.eq.s32.totalorder %s13, 1
      %p30 = por %p28, %p29
      %p31 = scmp.ne.s32.totalorder %s23, %s26
      %p32 = scmp.eq.s32.totalorder %s13, 0
      %p33 = por %p31, %p32
      %p34 = scmp.ne.s32.totalorder %s23, %s26
      %p35 = scmp.eq.s32.totalorder %s18, 1
      %p36 = por %p34, %p35
      %p37 = scmp.ne.s32.totalorder %s26, %s27
      %p38 = scmp.eq.s32.totalorder %s18, 0
      %p39 = por %p37, %p38
      %p40 = scmp.ne.s32.totalorder %s26, %s27
      %p41 = scmp.eq.s32.totalorder %s19, 1
      %p42 = por %p40, %p41
      %p44 = scmp.ne.s32.totalorder %s27, %s43
      %p45 = scmp.eq.s32.totalorder %s19, 0
      %p46 = por %p44, %p45
      %s48 = sadd.s32 %s47, 1
      %p51 = scmp.eq.s32.totalorder %s13, 1
      %p52 = scmp.ne.s32.totalorder %s47, %s49
      %p53 = scmp.eq.s32.totalorder %s13, 0
      %p54 = por %p52, %p53
      %p55 = scmp.ne.s32.totalorder %s47, %s49
      %p56 = scmp.eq.s32.totalorder %s18, 1
      %p57 = por %p55, %p56
      %p58 = scmp.ne.s32.totalorder %s49, %s50
      %p59 = scmp.eq.s32.totalorder %s18, 0
      %p60 = por %p58, %p59
      %p61 = scmp.ne.s32.totalorder %s49, %s50
      %p62 = scmp.eq.s32.totalorder %s19, 1
      %p63 = por %p61, %p62
      %p65 = scmp.ne.s32.totalorder %s50, %s64
      %p66 = scmp.eq.s32.totalorder %s19, 0
      %p67 = por %p65, %p66
      %s69 = sadd.s32 %s68, 1
      %p72 = scmp.eq.s32.totalorder %s13, 1
      %p73 = scmp.ne.s32.totalorder %s68, %s70
      %p74 = scmp.eq.s32.totalorder %s13, 0
      %p75 = por %p73, %p74
      %p76 = scmp.ne.s32.totalorder %s68, %s70
      %p77 = scmp.eq.s32.totalorder %s18, 1
      %p78 = por %p76, %p77
      %p79 = scmp.ne.s32.totalorder %s70, %s71
      %p80 = scmp.eq.s32.totalorder %s18, 0
      %p81 = por %p79, %p80
      %p82 = scmp.ne.s32.totalorder %s70, %s71
      %p83 = scmp.eq.s32.totalorder %s19, 1
      %p84 = por %p82, %p83
      %p86 = scmp.ne.s32.totalorder %s71, %s85
      %p87 = scmp.eq.s32.totalorder %s19, 0
      %p88 = por %p86, %p87
      %s89 = ssub.s32 %s13, %s20
      %p90 = scmp.eq.s32.totalorder %s89, 0
      %s92 = sadd.s32 %s91, 1
      %s93 = scalar_select %p90, %s91, %s92
      %p96 = pneg %p90
      %p97 = scmp.eq.s32.totalorder %s13, 1
      %p98 = por %p96, %p97
      %p99 = scmp.ne.s32.totalorder %s91, %s94
      %p100 = scmp.eq.s32.totalorder %s13, 0
      %p101 = por %p99, %p100
      %p102 = scmp.ne.s32.totalorder %s91, %s94
      %p103 = scmp.eq.s32.totalorder %s18, 1
      %p104 = por %p102, %p103
      %p105 = scmp.ne.s32.totalorder %s94, %s95
      %p106 = scmp.eq.s32.totalorder %s18, 0
      %p107 = por %p105, %p106
      %p108 = scmp.ne.s32.totalorder %s94, %s95
      %p109 = scmp.eq.s32.totalorder %s19, 1
      %p110 = por %p108, %p109
      %p112 = scmp.ne.s32.totalorder %s95, %s111
      %p113 = scmp.eq.s32.totalorder %s19, 0
      %p114 = por %p112, %p113
      %p115 = scmp.le.s32.totalorder 1, %s13
      %p116 = scmp.lt.s32.totalorder %s13, 3
      %p117 = pnand %p115, %p116
      %p118 = pneg %p117
      // Predicated region
      $region9: #{tpu_custom_call.1} parent=5 // pred_check
        _
      $region10: #{tpu_custom_call.1} parent=5 // pred_check_branch
        %120 = sbr.rel (%p117) target = $region12
      $region11: #{tpu_custom_call.1} parent=5 // pred_region
        %s121 = ssub.s32 %s13, 1
        // Predicated region
        $region13: #{tpu_custom_call.1} parent=11 // pred_check
          %p122 = pneg %p60
        $region14: #{tpu_custom_call.1} parent=11 // pred_check_branch
          %124 = sbr.rel (%p122) target = $region16
        $region15: #{tpu_custom_call.1} parent=11 // pred_region
          %s126 = ssub.s32 12288, 12288
          %127 = vsyncadd [#allocation3], %s126
          %s128 = sshll.u32 [#allocation2], 4
          %s129 = int_to_ptr.vmem [resolvable:$true] %s128
          %134 = dma.hbm_to_vmem [thread:$0]  %s1, 12288, %s129, [#allocation3], 128, 128, 8
        $region16: #{tpu_custom_call.1} parent=11 // pred_fallthru
          _
        // Predicated region
        $region17: #{tpu_custom_call.1} parent=11 // pred_check
          %p135 = pneg %p81
        $region18: #{tpu_custom_call.1} parent=11 // pred_check_branch
          %137 = sbr.rel (%p135) target = $region20
        $region19: #{tpu_custom_call.1} parent=11 // pred_region
          _
        $region20: #{tpu_custom_call.1} parent=11 // pred_fallthru
          _
      $region12: #{tpu_custom_call.1} parent=5 // pred_fallthru
        _
      %p138 = scmp.lt.s32.totalorder %s13, 2
      // Predicated region
      $region21: #{tpu_custom_call.1} parent=5 // pred_check
        %p139 = pneg %p138
      $region22: #{tpu_custom_call.1} parent=5 // pred_check_branch
        %141 = sbr.rel (%p139) target = $region24
      $region23: #{tpu_custom_call.1} parent=5 // pred_region
        // Predicated region
        $region25: #{tpu_custom_call.1} parent=23 // pred_check
          %p142 = pneg %p33
        $region26: #{tpu_custom_call.1} parent=23 // pred_check_branch
          %144 = sbr.rel (%p142) target = $region28
        $region27: #{tpu_custom_call.1} parent=23 // pred_region
          %s145 = smul.u32 16, %s13
          %p146 = scmp.lt.s32.totalorder %s145, 31
          %s147 = scalar_select %p146, %s145, 31
          %s148 = smul.addr %s147, 8
          %s149 = scalar_lea.vmem %s0, %s148
          %s150 = smul.u32 16, %s13
        $region28: #{tpu_custom_call.1} parent=23 // pred_fallthru
          _
      $region24: #{tpu_custom_call.1} parent=5 // pred_fallthru
        _
      %p151 = scmp.le.s32.totalorder 1, %s13
      %p152 = scmp.lt.s32.totalorder %s13, 3
      %p153 = pnand %p151, %p152
      %p154 = pneg %p153
      // Predicated region
      $region29: #{tpu_custom_call.1} parent=5 // pred_check
        _
      $region30: #{tpu_custom_call.1} parent=5 // pred_check_branch
        %156 = sbr.rel (%p153) target = $region32
      $region31: #{tpu_custom_call.1} parent=5 // pred_region
        %s157 = ssub.s32 %s13, 1
        // Predicated region
        $region33: #{tpu_custom_call.1} parent=31 // pred_check
          %p158 = pneg %p60
        $region34: #{tpu_custom_call.1} parent=31 // pred_check_branch
          %160 = sbr.rel (%p158) target = $region36
        $region35: #{tpu_custom_call.1} parent=31 // pred_region
          %161 = dma.done [#allocation3], 12288
        $region36: #{tpu_custom_call.1} parent=31 // pred_fallthru
          _
        %s162 = smul.u32 16, %s18
        %p163 = scmp.lt.s32.totalorder %s162, 31
        %s164 = scalar_select %p163, %s162, 31
        %s165 = smul.addr %s164, 8
        %s166 = scalar_lea.vmem %s0, %s165
        %p167 = pneg %p39
        %p168 = pneg %p36
        %p169 = pneg %p60
        %p170 = pneg %p57
        %p171 = pneg %p81
        %p172 = pneg %p78
        %p173 = pneg %p107
        %p174 = pneg %p104
        %s175 = sand.u32 %s94, 1
        %s176 = scalar_lea.sflag [#allocation4], %s175
        %s177 = sand.u32 %s94, 1
        %s178 = smul.addr %s177, 128
        %s179 = scalar_lea.vmem [#allocation5], %s178
        %s180 = smul.u32 16, %s18
        %p181 = scmp.lt.s32.totalorder %s180, 31
        %s182 = scalar_select %p181, %s180, 31
        %s183 = smul.addr %s182, 8
        %s184 = scalar_lea.vmem %s0, %s183
        %s185 = smul.u32 16, %s18
        %s186 = smul.u32 16, %s18
        %v187 = vld [vmem:[%s184] sm:$0xff]
        %v188 = vld [vmem:[%s184 + $0x8] sm:$0xff]
        %v189 = vld [vmem:[%s184 + $0x10] sm:$0xff]
        %v190 = vld [vmem:[%s184 + $0x18] sm:$0xff]
        %v191 = vld [vmem:[%s184 + $0x20] sm:$0xff]
        %v192 = vld [vmem:[%s184 + $0x28] sm:$0xff]
        %v193 = vld [vmem:[%s184 + $0x30] sm:$0xff]
        %v194 = vld [vmem:[%s184 + $0x38] sm:$0xff]
        %v195 = vld [vmem:[%s184 + $0x40] sm:$0xff]
        %v196 = vld [vmem:[%s184 + $0x48] sm:$0xff]
        %v197 = vld [vmem:[%s184 + $0x50] sm:$0xff]
        %v198 = vld [vmem:[%s184 + $0x58] sm:$0xff]
        %v199 = vld [vmem:[%s184 + $0x60] sm:$0xff]
        %v200 = vld [vmem:[%s184 + $0x68] sm:$0xff]
        %v201 = vld [vmem:[%s184 + $0x70] sm:$0xff]
        %v202 = vld [vmem:[%s184 + $0x78] sm:$0xff]
        %v203 = vld [vmem:[%s2] sm:$0x3f]
        %v204 = vld [vmem:[#allocation2] sm:$0xff]
        %v205 = vlaneseq
        %v206 = vshrl.u32 %v205, 7
        %v207 = vsub.s32 0, %v206
        %v208 = vrot.slane %v203, %v207
        %vm209 = vcmask 64512
        %v211 = vsel %vm209, %v187, 0
        %v214 = vsel %vm209, %v188, 0
        %v217 = vsel %vm209, %v189, 0
        %v220 = vsel %vm209, %v190, 0
        %v223 = vsel %vm209, %v191, 0
        %v226 = vsel %vm209, %v192, 0
        %v229 = vsel %vm209, %v193, 0
        %v232 = vsel %vm209, %v194, 0
        %v235 = vsel %vm209, %v195, 0
        %v238 = vsel %vm209, %v196, 0
        %v241 = vsel %vm209, %v197, 0
        %v244 = vsel %vm209, %v198, 0
        %v247 = vsel %vm209, %v199, 0
        %v250 = vsel %vm209, %v200, 0
        %v253 = vsel %vm209, %v201, 0
        %v256 = vsel %vm209, %v202, 0
        %258 = vmatprep.subr.mxu0 0.0
        %259 = vmatpush1.msra.mxu0 0.0
        %260 = vmatprep.subr.mxu0 0.0
        %261 = vmatpush1.msra.mxu0 0.0
        %262 = vmatprep.subr.mxu0 0.0
        %263 = vmatpush1.msra.mxu0 0.0
        %264 = vmatprep.subr.mxu0 0.0
        %265 = vmatpush1.msra.mxu0 0.0
        %266 = vmatprep.subr.mxu0 0.0
        %267 = vmatpush1.msra.mxu0 0.0
        %268 = vmatprep.subr.mxu0 0.0
        %269 = vmatpush1.msra.mxu0 0.0
        %270 = vmatprep.subr.mxu0 0.0
        %271 = vmatpush1.msra.mxu0 0.0
        %272 = vmatprep.subr.mxu0 0.0
        %273 = vmatpush1.msra.mxu0 0.0
        %274 = vmatprep.subr.mxu0 0.0
        %275 = vmatpush1.msra.mxu0 0.0
        %276 = vmatprep.subr.mxu0 0.0
        %277 = vmatpush1.msra.mxu0 0.0
        %278 = vmatprep.subr.mxu0 0.0
        %279 = vmatpush1.msra.mxu0 0.0
        %280 = vmatprep.subr.mxu0 0.0
        %281 = vmatpush1.msra.mxu0 0.0
        %282 = vmatprep.subr.mxu0 0.0
        %283 = vmatpush1.msra.mxu0 0.0
        %284 = vmatprep.subr.mxu0 0.0
        %285 = vmatpush1.msra.mxu0 0.0
        %286 = vmatprep.subr.mxu0 0.0
        %287 = vmatpush1.msra.mxu0 0.0
        %288 = vmatprep.subr.mxu0 0.0
        %289 = vmatpush1.msra.mxu0 %v204
        %290 = vmatprep.subr.mxu0 0.0
        %291 = vmatpush2.msra.mxu0 0.0
        %292 = vmatprep.subr.mxu0 0.0
        %293 = vmatpush2.msra.mxu0 0.0
        %294 = vmatprep.subr.mxu0 0.0
        %295 = vmatpush2.msra.mxu0 0.0
        %296 = vmatprep.subr.mxu0 0.0
        %297 = vmatpush2.msra.mxu0 0.0
        %298 = vmatprep.subr.mxu0 0.0
        %299 = vmatpush2.msra.mxu0 0.0
        %300 = vmatprep.subr.mxu0 0.0
        %301 = vmatpush2.msra.mxu0 0.0
        %302 = vmatprep.subr.mxu0 0.0
        %303 = vmatpush2.msra.mxu0 0.0
        %304 = vmatprep.subr.mxu0 0.0
        %305 = vmatpush2.msra.mxu0 0.0
        %306 = vmatprep.subr.mxu0 0.0
        %307 = vmatpush2.msra.mxu0 0.0
        %308 = vmatprep.subr.mxu0 0.0
        %309 = vmatpush2.msra.mxu0 0.0
        %310 = vmatprep.subr.mxu0 0.0
        %311 = vmatpush2.msra.mxu0 0.0
        %312 = vmatprep.subr.mxu0 0.0
        %313 = vmatpush2.msra.mxu0 0.0
        %314 = vmatprep.subr.mxu0 0.0
        %315 = vmatpush2.msra.mxu0 0.0
        %316 = vmatprep.subr.mxu0 0.0
        %317 = vmatpush2.msra.mxu0 0.0
        %318 = vmatprep.subr.mxu0 0.0
        %319 = vmatpush2.msra.mxu0 0.0
        %320 = vmatprep.subr.mxu0 0.0
        %321 = vmatpush2.msra.mxu0 0.0
        %322 = vmatprep.mubr.f32.mxu0 0.0
        %323 = vmatmul.mubr.f32.gmra.mxu0 %v211
        %v324 = vpop.f32.mrf.mxu0
        %v325 = vadd.f32 %v208, %v324
        %v326 = vpop.f32.mrf.mxu0
        %327 = vmatprep.mubr.f32.mxu0 0.0
        %328 = vmatmul.mubr.f32.gmra.mxu0 %v214
        %v329 = vpop.f32.mrf.mxu0
        %v330 = vadd.f32 %v208, %v329
        %v331 = vpop.f32.mrf.mxu0
        %332 = vmatprep.mubr.f32.mxu0 0.0
        %333 = vmatmul.mubr.f32.gmra.mxu0 %v217
        %v334 = vpop.f32.mrf.mxu0
        %v335 = vadd.f32 %v208, %v334
        %v336 = vpop.f32.mrf.mxu0
        %337 = vmatprep.mubr.f32.mxu0 0.0
        %338 = vmatmul.mubr.f32.gmra.mxu0 %v220
        %v339 = vpop.f32.mrf.mxu0
        %v340 = vadd.f32 %v208, %v339
        %v341 = vpop.f32.mrf.mxu0
        %342 = vmatprep.mubr.f32.mxu0 0.0
        %343 = vmatmul.mubr.f32.gmra.mxu0 %v223
        %v344 = vpop.f32.mrf.mxu0
        %v345 = vadd.f32 %v208, %v344
        %v346 = vpop.f32.mrf.mxu0
        %347 = vmatprep.mubr.f32.mxu0 0.0
        %348 = vmatmul.mubr.f32.gmra.mxu0 %v226
        %v349 = vpop.f32.mrf.mxu0
        %v350 = vadd.f32 %v208, %v349
        %v351 = vpop.f32.mrf.mxu0
        %352 = vmatprep.mubr.f32.mxu0 0.0
        %353 = vmatmul.mubr.f32.gmra.mxu0 %v229
        %v354 = vpop.f32.mrf.mxu0
        %v355 = vadd.f32 %v208, %v354
        %v356 = vpop.f32.mrf.mxu0
        %357 = vmatprep.mubr.f32.mxu0 0.0
        %358 = vmatmul.mubr.f32.gmra.mxu0 %v232
        %v359 = vpop.f32.mrf.mxu0
        %v360 = vadd.f32 %v208, %v359
        %v361 = vpop.f32.mrf.mxu0
        %362 = vmatprep.mubr.f32.mxu0 0.0
        %363 = vmatmul.mubr.f32.gmra.mxu0 %v235
        %v364 = vpop.f32.mrf.mxu0
        %v365 = vadd.f32 %v208, %v364
        %v366 = vpop.f32.mrf.mxu0
        %367 = vmatprep.mubr.f32.mxu0 0.0
        %368 = vmatmul.mubr.f32.gmra.mxu0 %v238
        %v369 = vpop.f32.mrf.mxu0
        %v370 = vadd.f32 %v208, %v369
        %v371 = vpop.f32.mrf.mxu0
        %372 = vmatprep.mubr.f32.mxu0 0.0
        %373 = vmatmul.mubr.f32.gmra.mxu0 %v241
        %v374 = vpop.f32.mrf.mxu0
        %v375 = vadd.f32 %v208, %v374
        %v376 = vpop.f32.mrf.mxu0
        %377 = vmatprep.mubr.f32.mxu0 0.0
        %378 = vmatmul.mubr.f32.gmra.mxu0 %v244
        %v379 = vpop.f32.mrf.mxu0
        %v380 = vadd.f32 %v208, %v379
        %v381 = vpop.f32.mrf.mxu0
        %382 = vmatprep.mubr.f32.mxu0 0.0
        %383 = vmatmul.mubr.f32.gmra.mxu0 %v247
        %v384 = vpop.f32.mrf.mxu0
        %v385 = vadd.f32 %v208, %v384
        %v386 = vpop.f32.mrf.mxu0
        %387 = vmatprep.mubr.f32.mxu0 0.0
        %388 = vmatmul.mubr.f32.gmra.mxu0 %v250
        %v389 = vpop.f32.mrf.mxu0
        %v390 = vadd.f32 %v208, %v389
        %v391 = vpop.f32.mrf.mxu0
        %392 = vmatprep.mubr.f32.mxu0 0.0
        %393 = vmatmul.mubr.f32.gmra.mxu0 %v253
        %v394 = vpop.f32.mrf.mxu0
        %v395 = vadd.f32 %v208, %v394
        %v396 = vpop.f32.mrf.mxu0
        %397 = vmatprep.mubr.f32.mxu0 0.0
        %398 = vmatmul.mubr.f32.gmra.mxu0 %v256
        %v399 = vpop.f32.mrf.mxu0
        %v400 = vadd.f32 %v208, %v399
        %v401 = vpop.f32.mrf.mxu0
        %402 = vdwg.mxu0
        %v403 = vmax.f32 %v325, 0.0
        %v404 = vmax.f32 %v330, 0.0
        %v405 = vmax.f32 %v335, 0.0
        %v406 = vmax.f32 %v340, 0.0
        %v407 = vmax.f32 %v345, 0.0
        %v408 = vmax.f32 %v350, 0.0
        %v409 = vmax.f32 %v355, 0.0
        %v410 = vmax.f32 %v360, 0.0
        %v411 = vmax.f32 %v365, 0.0
        %v412 = vmax.f32 %v370, 0.0
        %v413 = vmax.f32 %v375, 0.0
        %v414 = vmax.f32 %v380, 0.0
        %v415 = vmax.f32 %v385, 0.0
        %v416 = vmax.f32 %v390, 0.0
        %v417 = vmax.f32 %v395, 0.0
        %v418 = vmax.f32 %v400, 0.0
        %s419 = scalar_lea.vmem [#allocation2], 128
        %v420 = vld [vmem:[%s419] sm:$0xff]
        %v421 = vld [vmem:[%s419 + $0x8] sm:$0xff]
        %v422 = vld [vmem:[%s419 + $0x10] sm:$0xff]
        %v423 = vld [vmem:[%s419 + $0x18] sm:$0xff]
        %v424 = vld [vmem:[%s419 + $0x20] sm:$0xff]
        %v425 = vld [vmem:[%s419 + $0x28] sm:$0xff]
        %v426 = vld [vmem:[%s419 + $0x30] sm:$0xff]
        %v427 = vld [vmem:[%s419 + $0x38] sm:$0xff]
        %v428 = vld [vmem:[%s419 + $0x40] sm:$0xff]
        %v429 = vld [vmem:[%s419 + $0x48] sm:$0xff]
        %v430 = vld [vmem:[%s419 + $0x50] sm:$0xff]
        %v431 = vld [vmem:[%s419 + $0x58] sm:$0xff]
        %v432 = vld [vmem:[%s419 + $0x60] sm:$0xff]
        %v433 = vld [vmem:[%s419 + $0x68] sm:$0xff]
        %v434 = vld [vmem:[%s419 + $0x70] sm:$0xff]
        %v435 = vld [vmem:[%s419 + $0x78] sm:$0xff]
        %v436 = vlaneseq
        %v437 = vshrl.u32 %v436, 7
        %v438 = vsub.s32 1, %v437
        %v439 = vrot.slane %v203, %v438
        %440 = vmatprep.subr.mxu0 0.0
        %441 = vmatpush1.msra.mxu0 %v435
        %442 = vmatprep.subr.mxu0 0.0
        %443 = vmatpush1.msra.mxu0 %v434
        %444 = vmatprep.subr.mxu0 0.0
        %445 = vmatpush1.msra.mxu0 %v433
        %446 = vmatprep.subr.mxu0 0.0
        %447 = vmatpush1.msra.mxu0 %v432
        %448 = vmatprep.subr.mxu0 0.0
        %449 = vmatpush1.msra.mxu0 %v431
        %450 = vmatprep.subr.mxu0 0.0
        %451 = vmatpush1.msra.mxu0 %v430
        %452 = vmatprep.subr.mxu0 0.0
        %453 = vmatpush1.msra.mxu0 %v429
        %454 = vmatprep.subr.mxu0 0.0
        %455 = vmatpush1.msra.mxu0 %v428
        %456 = vmatprep.subr.mxu0 0.0
        %457 = vmatpush1.msra.mxu0 %v427
        %458 = vmatprep.subr.mxu0 0.0
        %459 = vmatpush1.msra.mxu0 %v426
        %460 = vmatprep.subr.mxu0 0.0
        %461 = vmatpush1.msra.mxu0 %v425
        %462 = vmatprep.subr.mxu0 0.0
        %463 = vmatpush1.msra.mxu0 %v424
        %464 = vmatprep.subr.mxu0 0.0
        %465 = vmatpush1.msra.mxu0 %v423
        %466 = vmatprep.subr.mxu0 0.0
        %467 = vmatpush1.msra.mxu0 %v422
        %468 = vmatprep.subr.mxu0 0.0
        %469 = vmatpush1.msra.mxu0 %v421
        %470 = vmatprep.subr.mxu0 0.0
        %471 = vmatpush1.msra.mxu0 %v420
        %472 = vmatprep.subr.mxu0 0.0
        %473 = vmatpush2.msra.mxu0 0.0
        %474 = vmatprep.subr.mxu0 0.0
        %475 = vmatpush2.msra.mxu0 0.0
        %476 = vmatprep.subr.mxu0 0.0
        %477 = vmatpush2.msra.mxu0 0.0
        %478 = vmatprep.subr.mxu0 0.0
        %479 = vmatpush2.msra.mxu0 0.0
        %480 = vmatprep.subr.mxu0 0.0
        %481 = vmatpush2.msra.mxu0 0.0
        %482 = vmatprep.subr.mxu0 0.0
        %483 = vmatpush2.msra.mxu0 0.0
        %484 = vmatprep.subr.mxu0 0.0
        %485 = vmatpush2.msra.mxu0 0.0
        %486 = vmatprep.subr.mxu0 0.0
        %487 = vmatpush2.msra.mxu0 0.0
        %488 = vmatprep.subr.mxu0 0.0
        %489 = vmatpush2.msra.mxu0 0.0
        %490 = vmatprep.subr.mxu0 0.0
        %491 = vmatpush2.msra.mxu0 0.0
        %492 = vmatprep.subr.mxu0 0.0
        %493 = vmatpush2.msra.mxu0 0.0
        %494 = vmatprep.subr.mxu0 0.0
        %495 = vmatpush2.msra.mxu0 0.0
        %496 = vmatprep.subr.mxu0 0.0
        %497 = vmatpush2.msra.mxu0 0.0
        %498 = vmatprep.subr.mxu0 0.0
        %499 = vmatpush2.msra.mxu0 0.0
        %500 = vmatprep.subr.mxu0 0.0
        %501 = vmatpush2.msra.mxu0 0.0
        %502 = vmatprep.subr.mxu0 0.0
        %503 = vmatpush2.msra.mxu0 0.0
        %504 = vmatprep.mubr.f32.mxu0 0.0
        %505 = vmatmul.mubr.f32.gmra.mxu0 %v403
        %v506 = vpop.f32.mrf.mxu0
        %v507 = vadd.f32 %v439, %v506
        %v508 = vpop.f32.mrf.mxu0
        %509 = vmatprep.mubr.f32.mxu0 0.0
        %510 = vmatmul.mubr.f32.gmra.mxu0 %v404
        %v511 = vpop.f32.mrf.mxu0
        %v512 = vadd.f32 %v439, %v511
        %v513 = vpop.f32.mrf.mxu0
        %514 = vmatprep.mubr.f32.mxu0 0.0
        %515 = vmatmul.mubr.f32.gmra.mxu0 %v405
        %v516 = vpop.f32.mrf.mxu0
        %v517 = vadd.f32 %v439, %v516
        %v518 = vpop.f32.mrf.mxu0
        %519 = vmatprep.mubr.f32.mxu0 0.0
        %520 = vmatmul.mubr.f32.gmra.mxu0 %v406
        %v521 = vpop.f32.mrf.mxu0
        %v522 = vadd.f32 %v439, %v521
        %v523 = vpop.f32.mrf.mxu0
        %524 = vmatprep.mubr.f32.mxu0 0.0
        %525 = vmatmul.mubr.f32.gmra.mxu0 %v407
        %v526 = vpop.f32.mrf.mxu0
        %v527 = vadd.f32 %v439, %v526
        %v528 = vpop.f32.mrf.mxu0
        %529 = vmatprep.mubr.f32.mxu0 0.0
        %530 = vmatmul.mubr.f32.gmra.mxu0 %v408
        %v531 = vpop.f32.mrf.mxu0
        %v532 = vadd.f32 %v439, %v531
        %v533 = vpop.f32.mrf.mxu0
        %534 = vmatprep.mubr.f32.mxu0 0.0
        %535 = vmatmul.mubr.f32.gmra.mxu0 %v409
        %v536 = vpop.f32.mrf.mxu0
        %v537 = vadd.f32 %v439, %v536
        %v538 = vpop.f32.mrf.mxu0
        %539 = vmatprep.mubr.f32.mxu0 0.0
        %540 = vmatmul.mubr.f32.gmra.mxu0 %v410
        %v541 = vpop.f32.mrf.mxu0
        %v542 = vadd.f32 %v439, %v541
        %v543 = vpop.f32.mrf.mxu0
        %544 = vmatprep.mubr.f32.mxu0 0.0
        %545 = vmatmul.mubr.f32.gmra.mxu0 %v411
        %v546 = vpop.f32.mrf.mxu0
        %v547 = vadd.f32 %v439, %v546
        %v548 = vpop.f32.mrf.mxu0
        %549 = vmatprep.mubr.f32.mxu0 0.0
        %550 = vmatmul.mubr.f32.gmra.mxu0 %v412
        %v551 = vpop.f32.mrf.mxu0
        %v552 = vadd.f32 %v439, %v551
        %v553 = vpop.f32.mrf.mxu0
        %554 = vmatprep.mubr.f32.mxu0 0.0
        %555 = vmatmul.mubr.f32.gmra.mxu0 %v413
        %v556 = vpop.f32.mrf.mxu0
        %v557 = vadd.f32 %v439, %v556
        %v558 = vpop.f32.mrf.mxu0
        %559 = vmatprep.mubr.f32.mxu0 0.0
        %560 = vmatmul.mubr.f32.gmra.mxu0 %v414
        %v561 = vpop.f32.mrf.mxu0
        %v562 = vadd.f32 %v439, %v561
        %v563 = vpop.f32.mrf.mxu0
        %564 = vmatprep.mubr.f32.mxu0 0.0
        %565 = vmatmul.mubr.f32.gmra.mxu0 %v415
        %v566 = vpop.f32.mrf.mxu0
        %v567 = vadd.f32 %v439, %v566
        %v568 = vpop.f32.mrf.mxu0
        %569 = vmatprep.mubr.f32.mxu0 0.0
        %570 = vmatmul.mubr.f32.gmra.mxu0 %v416
        %v571 = vpop.f32.mrf.mxu0
        %v572 = vadd.f32 %v439, %v571
        %v573 = vpop.f32.mrf.mxu0
        %574 = vmatprep.mubr.f32.mxu0 0.0
        %575 = vmatmul.mubr.f32.gmra.mxu0 %v417
        %v576 = vpop.f32.mrf.mxu0
        %v577 = vadd.f32 %v439, %v576
        %v578 = vpop.f32.mrf.mxu0
        %579 = vmatprep.mubr.f32.mxu0 0.0
        %580 = vmatmul.mubr.f32.gmra.mxu0 %v418
        %v581 = vpop.f32.mrf.mxu0
        %v582 = vadd.f32 %v439, %v581
        %v583 = vpop.f32.mrf.mxu0
        %584 = vdwg.mxu0
        %v585 = vmax.f32 %v507, 0.0
        %v586 = vmax.f32 %v512, 0.0
        %v587 = vmax.f32 %v517, 0.0
        %v588 = vmax.f32 %v522, 0.0
        %v589 = vmax.f32 %v527, 0.0
        %v590 = vmax.f32 %v532, 0.0
        %v591 = vmax.f32 %v537, 0.0
        %v592 = vmax.f32 %v542, 0.0
        %v593 = vmax.f32 %v547, 0.0
        %v594 = vmax.f32 %v552, 0.0
        %v595 = vmax.f32 %v557, 0.0
        %v596 = vmax.f32 %v562, 0.0
        %v597 = vmax.f32 %v567, 0.0
        %v598 = vmax.f32 %v572, 0.0
        %v599 = vmax.f32 %v577, 0.0
        %v600 = vmax.f32 %v582, 0.0
        %s601 = scalar_lea.vmem [#allocation2], 256
        %v602 = vld [vmem:[%s601] sm:$0xff]
        %v603 = vld [vmem:[%s601 + $0x8] sm:$0xff]
        %v604 = vld [vmem:[%s601 + $0x10] sm:$0xff]
        %v605 = vld [vmem:[%s601 + $0x18] sm:$0xff]
        %v606 = vld [vmem:[%s601 + $0x20] sm:$0xff]
        %v607 = vld [vmem:[%s601 + $0x28] sm:$0xff]
        %v608 = vld [vmem:[%s601 + $0x30] sm:$0xff]
        %v609 = vld [vmem:[%s601 + $0x38] sm:$0xff]
        %v610 = vld [vmem:[%s601 + $0x40] sm:$0xff]
        %v611 = vld [vmem:[%s601 + $0x48] sm:$0xff]
        %v612 = vld [vmem:[%s601 + $0x50] sm:$0xff]
        %v613 = vld [vmem:[%s601 + $0x58] sm:$0xff]
        %v614 = vld [vmem:[%s601 + $0x60] sm:$0xff]
        %v615 = vld [vmem:[%s601 + $0x68] sm:$0xff]
        %v616 = vld [vmem:[%s601 + $0x70] sm:$0xff]
        %v617 = vld [vmem:[%s601 + $0x78] sm:$0xff]
        %v618 = vlaneseq
        %v619 = vshrl.u32 %v618, 7
        %v620 = vsub.s32 2, %v619
        %v621 = vrot.slane %v203, %v620
        %622 = vmatprep.subr.mxu0 0.0
        %623 = vmatpush1.msra.mxu0 %v617
        %624 = vmatprep.subr.mxu0 0.0
        %625 = vmatpush1.msra.mxu0 %v616
        %626 = vmatprep.subr.mxu0 0.0
        %627 = vmatpush1.msra.mxu0 %v615
        %628 = vmatprep.subr.mxu0 0.0
        %629 = vmatpush1.msra.mxu0 %v614
        %630 = vmatprep.subr.mxu0 0.0
        %631 = vmatpush1.msra.mxu0 %v613
        %632 = vmatprep.subr.mxu0 0.0
        %633 = vmatpush1.msra.mxu0 %v612
        %634 = vmatprep.subr.mxu0 0.0
        %635 = vmatpush1.msra.mxu0 %v611
        %636 = vmatprep.subr.mxu0 0.0
        %637 = vmatpush1.msra.mxu0 %v610
        %638 = vmatprep.subr.mxu0 0.0
        %639 = vmatpush1.msra.mxu0 %v609
        %640 = vmatprep.subr.mxu0 0.0
        %641 = vmatpush1.msra.mxu0 %v608
        %642 = vmatprep.subr.mxu0 0.0
        %643 = vmatpush1.msra.mxu0 %v607
        %644 = vmatprep.subr.mxu0 0.0
        %645 = vmatpush1.msra.mxu0 %v606
        %646 = vmatprep.subr.mxu0 0.0
        %647 = vmatpush1.msra.mxu0 %v605
        %648 = vmatprep.subr.mxu0 0.0
        %649 = vmatpush1.msra.mxu0 %v604
        %650 = vmatprep.subr.mxu0 0.0
        %651 = vmatpush1.msra.mxu0 %v603
        %652 = vmatprep.subr.mxu0 0.0
        %653 = vmatpush1.msra.mxu0 %v602
        %654 = vmatprep.subr.mxu0 0.0
        %655 = vmatpush2.msra.mxu0 0.0
        %656 = vmatprep.subr.mxu0 0.0
        %657 = vmatpush2.msra.mxu0 0.0
        %658 = vmatprep.subr.mxu0 0.0
        %659 = vmatpush2.msra.mxu0 0.0
        %660 = vmatprep.subr.mxu0 0.0
        %661 = vmatpush2.msra.mxu0 0.0
        %662 = vmatprep.subr.mxu0 0.0
        %663 = vmatpush2.msra.mxu0 0.0
        %664 = vmatprep.subr.mxu0 0.0
        %665 = vmatpush2.msra.mxu0 0.0
        %666 = vmatprep.subr.mxu0 0.0
        %667 = vmatpush2.msra.mxu0 0.0
        %668 = vmatprep.subr.mxu0 0.0
        %669 = vmatpush2.msra.mxu0 0.0
        %670 = vmatprep.subr.mxu0 0.0
        %671 = vmatpush2.msra.mxu0 0.0
        %672 = vmatprep.subr.mxu0 0.0
        %673 = vmatpush2.msra.mxu0 0.0
        %674 = vmatprep.subr.mxu0 0.0
        %675 = vmatpush2.msra.mxu0 0.0
        %676 = vmatprep.subr.mxu0 0.0
        %677 = vmatpush2.msra.mxu0 0.0
        %678 = vmatprep.subr.mxu0 0.0
        %679 = vmatpush2.msra.mxu0 0.0
        %680 = vmatprep.subr.mxu0 0.0
        %681 = vmatpush2.msra.mxu0 0.0
        %682 = vmatprep.subr.mxu0 0.0
        %683 = vmatpush2.msra.mxu0 0.0
        %684 = vmatprep.subr.mxu0 0.0
        %685 = vmatpush2.msra.mxu0 0.0
        %686 = vmatprep.mubr.f32.mxu0 0.0
        %687 = vmatmul.mubr.f32.gmra.mxu0 %v585
        %v688 = vpop.f32.mrf.mxu0
        %v689 = vadd.f32 %v621, %v688
        %v690 = vpop.f32.mrf.mxu0
        %691 = vmatprep.mubr.f32.mxu0 0.0
        %692 = vmatmul.mubr.f32.gmra.mxu0 %v586
        %v693 = vpop.f32.mrf.mxu0
        %v694 = vadd.f32 %v621, %v693
        %v695 = vpop.f32.mrf.mxu0
        %696 = vmatprep.mubr.f32.mxu0 0.0
        %697 = vmatmul.mubr.f32.gmra.mxu0 %v587
        %v698 = vpop.f32.mrf.mxu0
        %v699 = vadd.f32 %v621, %v698
        %v700 = vpop.f32.mrf.mxu0
        %701 = vmatprep.mubr.f32.mxu0 0.0
        %702 = vmatmul.mubr.f32.gmra.mxu0 %v588
        %v703 = vpop.f32.mrf.mxu0
        %v704 = vadd.f32 %v621, %v703
        %v705 = vpop.f32.mrf.mxu0
        %706 = vmatprep.mubr.f32.mxu0 0.0
        %707 = vmatmul.mubr.f32.gmra.mxu0 %v589
        %v708 = vpop.f32.mrf.mxu0
        %v709 = vadd.f32 %v621, %v708
        %v710 = vpop.f32.mrf.mxu0
        %711 = vmatprep.mubr.f32.mxu0 0.0
        %712 = vmatmul.mubr.f32.gmra.mxu0 %v590
        %v713 = vpop.f32.mrf.mxu0
        %v714 = vadd.f32 %v621, %v713
        %v715 = vpop.f32.mrf.mxu0
        %716 = vmatprep.mubr.f32.mxu0 0.0
        %717 = vmatmul.mubr.f32.gmra.mxu0 %v591
        %v718 = vpop.f32.mrf.mxu0
        %v719 = vadd.f32 %v621, %v718
        %v720 = vpop.f32.mrf.mxu0
        %721 = vmatprep.mubr.f32.mxu0 0.0
        %722 = vmatmul.mubr.f32.gmra.mxu0 %v592
        %v723 = vpop.f32.mrf.mxu0
        %v724 = vadd.f32 %v621, %v723
        %v725 = vpop.f32.mrf.mxu0
        %726 = vmatprep.mubr.f32.mxu0 0.0
        %727 = vmatmul.mubr.f32.gmra.mxu0 %v593
        %v728 = vpop.f32.mrf.mxu0
        %v729 = vadd.f32 %v621, %v728
        %v730 = vpop.f32.mrf.mxu0
        %731 = vmatprep.mubr.f32.mxu0 0.0
        %732 = vmatmul.mubr.f32.gmra.mxu0 %v594
        %v733 = vpop.f32.mrf.mxu0
        %v734 = vadd.f32 %v621, %v733
        %v735 = vpop.f32.mrf.mxu0
        %736 = vmatprep.mubr.f32.mxu0 0.0
        %737 = vmatmul.mubr.f32.gmra.mxu0 %v595
        %v738 = vpop.f32.mrf.mxu0
        %v739 = vadd.f32 %v621, %v738
        %v740 = vpop.f32.mrf.mxu0
        %741 = vmatprep.mubr.f32.mxu0 0.0
        %742 = vmatmul.mubr.f32.gmra.mxu0 %v596
        %v743 = vpop.f32.mrf.mxu0
        %v744 = vadd.f32 %v621, %v743
        %v745 = vpop.f32.mrf.mxu0
        %746 = vmatprep.mubr.f32.mxu0 0.0
        %747 = vmatmul.mubr.f32.gmra.mxu0 %v597
        %v748 = vpop.f32.mrf.mxu0
        %v749 = vadd.f32 %v621, %v748
        %v750 = vpop.f32.mrf.mxu0
        %751 = vmatprep.mubr.f32.mxu0 0.0
        %752 = vmatmul.mubr.f32.gmra.mxu0 %v598
        %v753 = vpop.f32.mrf.mxu0
        %v754 = vadd.f32 %v621, %v753
        %v755 = vpop.f32.mrf.mxu0
        %756 = vmatprep.mubr.f32.mxu0 0.0
        %757 = vmatmul.mubr.f32.gmra.mxu0 %v599
        %v758 = vpop.f32.mrf.mxu0
        %v759 = vadd.f32 %v621, %v758
        %v760 = vpop.f32.mrf.mxu0
        %761 = vmatprep.mubr.f32.mxu0 0.0
        %762 = vmatmul.mubr.f32.gmra.mxu0 %v600
        %v763 = vpop.f32.mrf.mxu0
        %v764 = vadd.f32 %v621, %v763
        %v765 = vpop.f32.mrf.mxu0
        %766 = vdwg.mxu0
        %v767 = vmax.f32 %v689, 0.0
        %v768 = vmax.f32 %v694, 0.0
        %v769 = vmax.f32 %v699, 0.0
        %v770 = vmax.f32 %v704, 0.0
        %v771 = vmax.f32 %v709, 0.0
        %v772 = vmax.f32 %v714, 0.0
        %v773 = vmax.f32 %v719, 0.0
        %v774 = vmax.f32 %v724, 0.0
        %v775 = vmax.f32 %v729, 0.0
        %v776 = vmax.f32 %v734, 0.0
        %v777 = vmax.f32 %v739, 0.0
        %v778 = vmax.f32 %v744, 0.0
        %v779 = vmax.f32 %v749, 0.0
        %v780 = vmax.f32 %v754, 0.0
        %v781 = vmax.f32 %v759, 0.0
        %v782 = vmax.f32 %v764, 0.0
        %s783 = scalar_lea.vmem [#allocation2], 384
        %v784 = vld [vmem:[%s783] sm:$0xff]
        %v785 = vld [vmem:[%s783 + $0x8] sm:$0xff]
        %v786 = vld [vmem:[%s783 + $0x10] sm:$0xff]
        %v787 = vld [vmem:[%s783 + $0x18] sm:$0xff]
        %v788 = vld [vmem:[%s783 + $0x20] sm:$0xff]
        %v789 = vld [vmem:[%s783 + $0x28] sm:$0xff]
        %v790 = vld [vmem:[%s783 + $0x30] sm:$0xff]
        %v791 = vld [vmem:[%s783 + $0x38] sm:$0xff]
        %v792 = vld [vmem:[%s783 + $0x40] sm:$0xff]
        %v793 = vld [vmem:[%s783 + $0x48] sm:$0xff]
        %v794 = vld [vmem:[%s783 + $0x50] sm:$0xff]
        %v795 = vld [vmem:[%s783 + $0x58] sm:$0xff]
        %v796 = vld [vmem:[%s783 + $0x60] sm:$0xff]
        %v797 = vld [vmem:[%s783 + $0x68] sm:$0xff]
        %v798 = vld [vmem:[%s783 + $0x70] sm:$0xff]
        %v799 = vld [vmem:[%s783 + $0x78] sm:$0xff]
        %v800 = vlaneseq
        %v801 = vshrl.u32 %v800, 7
        %v802 = vsub.s32 3, %v801
        %v803 = vrot.slane %v203, %v802
        %804 = vmatprep.subr.mxu0 0.0
        %805 = vmatpush1.msra.mxu0 %v799
        %806 = vmatprep.subr.mxu0 0.0
        %807 = vmatpush1.msra.mxu0 %v798
        %808 = vmatprep.subr.mxu0 0.0
        %809 = vmatpush1.msra.mxu0 %v797
        %810 = vmatprep.subr.mxu0 0.0
        %811 = vmatpush1.msra.mxu0 %v796
        %812 = vmatprep.subr.mxu0 0.0
        %813 = vmatpush1.msra.mxu0 %v795
        %814 = vmatprep.subr.mxu0 0.0
        %815 = vmatpush1.msra.mxu0 %v794
        %816 = vmatprep.subr.mxu0 0.0
        %817 = vmatpush1.msra.mxu0 %v793
        %818 = vmatprep.subr.mxu0 0.0
        %819 = vmatpush1.msra.mxu0 %v792
        %820 = vmatprep.subr.mxu0 0.0
        %821 = vmatpush1.msra.mxu0 %v791
        %822 = vmatprep.subr.mxu0 0.0
        %823 = vmatpush1.msra.mxu0 %v790
        %824 = vmatprep.subr.mxu0 0.0
        %825 = vmatpush1.msra.mxu0 %v789
        %826 = vmatprep.subr.mxu0 0.0
        %827 = vmatpush1.msra.mxu0 %v788
        %828 = vmatprep.subr.mxu0 0.0
        %829 = vmatpush1.msra.mxu0 %v787
        %830 = vmatprep.subr.mxu0 0.0
        %831 = vmatpush1.msra.mxu0 %v786
        %832 = vmatprep.subr.mxu0 0.0
        %833 = vmatpush1.msra.mxu0 %v785
        %834 = vmatprep.subr.mxu0 0.0
        %835 = vmatpush1.msra.mxu0 %v784
        %836 = vmatprep.subr.mxu0 0.0
        %837 = vmatpush2.msra.mxu0 0.0
        %838 = vmatprep.subr.mxu0 0.0
        %839 = vmatpush2.msra.mxu0 0.0
        %840 = vmatprep.subr.mxu0 0.0
        %841 = vmatpush2.msra.mxu0 0.0
        %842 = vmatprep.subr.mxu0 0.0
        %843 = vmatpush2.msra.mxu0 0.0
        %844 = vmatprep.subr.mxu0 0.0
        %845 = vmatpush2.msra.mxu0 0.0
        %846 = vmatprep.subr.mxu0 0.0
        %847 = vmatpush2.msra.mxu0 0.0
        %848 = vmatprep.subr.mxu0 0.0
        %849 = vmatpush2.msra.mxu0 0.0
        %850 = vmatprep.subr.mxu0 0.0
        %851 = vmatpush2.msra.mxu0 0.0
        %852 = vmatprep.subr.mxu0 0.0
        %853 = vmatpush2.msra.mxu0 0.0
        %854 = vmatprep.subr.mxu0 0.0
        %855 = vmatpush2.msra.mxu0 0.0
        %856 = vmatprep.subr.mxu0 0.0
        %857 = vmatpush2.msra.mxu0 0.0
        %858 = vmatprep.subr.mxu0 0.0
        %859 = vmatpush2.msra.mxu0 0.0
        %860 = vmatprep.subr.mxu0 0.0
        %861 = vmatpush2.msra.mxu0 0.0
        %862 = vmatprep.subr.mxu0 0.0
        %863 = vmatpush2.msra.mxu0 0.0
        %864 = vmatprep.subr.mxu0 0.0
        %865 = vmatpush2.msra.mxu0 0.0
        %866 = vmatprep.subr.mxu0 0.0
        %867 = vmatpush2.msra.mxu0 0.0
        %868 = vmatprep.mubr.f32.mxu0 0.0
        %869 = vmatmul.mubr.f32.gmra.mxu0 %v767
        %v870 = vpop.f32.mrf.mxu0
        %v871 = vadd.f32 %v803, %v870
        %v872 = vpop.f32.mrf.mxu0
        %873 = vmatprep.mubr.f32.mxu0 0.0
        %874 = vmatmul.mubr.f32.gmra.mxu0 %v768
        %v875 = vpop.f32.mrf.mxu0
        %v876 = vadd.f32 %v803, %v875
        %v877 = vpop.f32.mrf.mxu0
        %878 = vmatprep.mubr.f32.mxu0 0.0
        %879 = vmatmul.mubr.f32.gmra.mxu0 %v769
        %v880 = vpop.f32.mrf.mxu0
        %v881 = vadd.f32 %v803, %v880
        %v882 = vpop.f32.mrf.mxu0
        %883 = vmatprep.mubr.f32.mxu0 0.0
        %884 = vmatmul.mubr.f32.gmra.mxu0 %v770
        %v885 = vpop.f32.mrf.mxu0
        %v886 = vadd.f32 %v803, %v885
        %v887 = vpop.f32.mrf.mxu0
        %888 = vmatprep.mubr.f32.mxu0 0.0
        %889 = vmatmul.mubr.f32.gmra.mxu0 %v771
        %v890 = vpop.f32.mrf.mxu0
        %v891 = vadd.f32 %v803, %v890
        %v892 = vpop.f32.mrf.mxu0
        %893 = vmatprep.mubr.f32.mxu0 0.0
        %894 = vmatmul.mubr.f32.gmra.mxu0 %v772
        %v895 = vpop.f32.mrf.mxu0
        %v896 = vadd.f32 %v803, %v895
        %v897 = vpop.f32.mrf.mxu0
        %898 = vmatprep.mubr.f32.mxu0 0.0
        %899 = vmatmul.mubr.f32.gmra.mxu0 %v773
        %v900 = vpop.f32.mrf.mxu0
        %v901 = vadd.f32 %v803, %v900
        %v902 = vpop.f32.mrf.mxu0
        %903 = vmatprep.mubr.f32.mxu0 0.0
        %904 = vmatmul.mubr.f32.gmra.mxu0 %v774
        %v905 = vpop.f32.mrf.mxu0
        %v906 = vadd.f32 %v803, %v905
        %v907 = vpop.f32.mrf.mxu0
        %908 = vmatprep.mubr.f32.mxu0 0.0
        %909 = vmatmul.mubr.f32.gmra.mxu0 %v775
        %v910 = vpop.f32.mrf.mxu0
        %v911 = vadd.f32 %v803, %v910
        %v912 = vpop.f32.mrf.mxu0
        %913 = vmatprep.mubr.f32.mxu0 0.0
        %914 = vmatmul.mubr.f32.gmra.mxu0 %v776
        %v915 = vpop.f32.mrf.mxu0
        %v916 = vadd.f32 %v803, %v915
        %v917 = vpop.f32.mrf.mxu0
        %918 = vmatprep.mubr.f32.mxu0 0.0
        %919 = vmatmul.mubr.f32.gmra.mxu0 %v777
        %v920 = vpop.f32.mrf.mxu0
        %v921 = vadd.f32 %v803, %v920
        %v922 = vpop.f32.mrf.mxu0
        %923 = vmatprep.mubr.f32.mxu0 0.0
        %924 = vmatmul.mubr.f32.gmra.mxu0 %v778
        %v925 = vpop.f32.mrf.mxu0
        %v926 = vadd.f32 %v803, %v925
        %v927 = vpop.f32.mrf.mxu0
        %928 = vmatprep.mubr.f32.mxu0 0.0
        %929 = vmatmul.mubr.f32.gmra.mxu0 %v779
        %v930 = vpop.f32.mrf.mxu0
        %v931 = vadd.f32 %v803, %v930
        %v932 = vpop.f32.mrf.mxu0
        %933 = vmatprep.mubr.f32.mxu0 0.0
        %934 = vmatmul.mubr.f32.gmra.mxu0 %v780
        %v935 = vpop.f32.mrf.mxu0
        %v936 = vadd.f32 %v803, %v935
        %v937 = vpop.f32.mrf.mxu0
        %938 = vmatprep.mubr.f32.mxu0 0.0
        %939 = vmatmul.mubr.f32.gmra.mxu0 %v781
        %v940 = vpop.f32.mrf.mxu0
        %v941 = vadd.f32 %v803, %v940
        %v942 = vpop.f32.mrf.mxu0
        %943 = vmatprep.mubr.f32.mxu0 0.0
        %944 = vmatmul.mubr.f32.gmra.mxu0 %v782
        %v945 = vpop.f32.mrf.mxu0
        %v946 = vadd.f32 %v803, %v945
        %v947 = vpop.f32.mrf.mxu0
        %948 = vdwg.mxu0
        %v949 = vmax.f32 %v871, 0.0
        %v950 = vmax.f32 %v876, 0.0
        %v951 = vmax.f32 %v881, 0.0
        %v952 = vmax.f32 %v886, 0.0
        %v953 = vmax.f32 %v891, 0.0
        %v954 = vmax.f32 %v896, 0.0
        %v955 = vmax.f32 %v901, 0.0
        %v956 = vmax.f32 %v906, 0.0
        %v957 = vmax.f32 %v911, 0.0
        %v958 = vmax.f32 %v916, 0.0
        %v959 = vmax.f32 %v921, 0.0
        %v960 = vmax.f32 %v926, 0.0
        %v961 = vmax.f32 %v931, 0.0
        %v962 = vmax.f32 %v936, 0.0
        %v963 = vmax.f32 %v941, 0.0
        %v964 = vmax.f32 %v946, 0.0
        %s965 = scalar_lea.vmem [#allocation2], 512
        %v966 = vld [vmem:[%s965] sm:$0xff]
        %v967 = vld [vmem:[%s965 + $0x8] sm:$0xff]
        %v968 = vld [vmem:[%s965 + $0x10] sm:$0xff]
        %v969 = vld [vmem:[%s965 + $0x18] sm:$0xff]
        %v970 = vld [vmem:[%s965 + $0x20] sm:$0xff]
        %v971 = vld [vmem:[%s965 + $0x28] sm:$0xff]
        %v972 = vld [vmem:[%s965 + $0x30] sm:$0xff]
        %v973 = vld [vmem:[%s965 + $0x38] sm:$0xff]
        %v974 = vld [vmem:[%s965 + $0x40] sm:$0xff]
        %v975 = vld [vmem:[%s965 + $0x48] sm:$0xff]
        %v976 = vld [vmem:[%s965 + $0x50] sm:$0xff]
        %v977 = vld [vmem:[%s965 + $0x58] sm:$0xff]
        %v978 = vld [vmem:[%s965 + $0x60] sm:$0xff]
        %v979 = vld [vmem:[%s965 + $0x68] sm:$0xff]
        %v980 = vld [vmem:[%s965 + $0x70] sm:$0xff]
        %v981 = vld [vmem:[%s965 + $0x78] sm:$0xff]
        %v982 = vlaneseq
        %v983 = vshrl.u32 %v982, 7
        %v984 = vsub.s32 4, %v983
        %v985 = vrot.slane %v203, %v984
        %986 = vmatprep.subr.mxu0 0.0
        %987 = vmatpush1.msra.mxu0 %v981
        %988 = vmatprep.subr.mxu0 0.0
        %989 = vmatpush1.msra.mxu0 %v980
        %990 = vmatprep.subr.mxu0 0.0
        %991 = vmatpush1.msra.mxu0 %v979
        %992 = vmatprep.subr.mxu0 0.0
        %993 = vmatpush1.msra.mxu0 %v978
        %994 = vmatprep.subr.mxu0 0.0
        %995 = vmatpush1.msra.mxu0 %v977
        %996 = vmatprep.subr.mxu0 0.0
        %997 = vmatpush1.msra.mxu0 %v976
        %998 = vmatprep.subr.mxu0 0.0
        %999 = vmatpush1.msra.mxu0 %v975
        %1000 = vmatprep.subr.mxu0 0.0
        %1001 = vmatpush1.msra.mxu0 %v974
        %1002 = vmatprep.subr.mxu0 0.0
        %1003 = vmatpush1.msra.mxu0 %v973
        %1004 = vmatprep.subr.mxu0 0.0
        %1005 = vmatpush1.msra.mxu0 %v972
        %1006 = vmatprep.subr.mxu0 0.0
        %1007 = vmatpush1.msra.mxu0 %v971
        %1008 = vmatprep.subr.mxu0 0.0
        %1009 = vmatpush1.msra.mxu0 %v970
        %1010 = vmatprep.subr.mxu0 0.0
        %1011 = vmatpush1.msra.mxu0 %v969
        %1012 = vmatprep.subr.mxu0 0.0
        %1013 = vmatpush1.msra.mxu0 %v968
        %1014 = vmatprep.subr.mxu0 0.0
        %1015 = vmatpush1.msra.mxu0 %v967
        %1016 = vmatprep.subr.mxu0 0.0
        %1017 = vmatpush1.msra.mxu0 %v966
        %1018 = vmatprep.subr.mxu0 0.0
        %1019 = vmatpush2.msra.mxu0 0.0
        %1020 = vmatprep.subr.mxu0 0.0
        %1021 = vmatpush2.msra.mxu0 0.0
        %1022 = vmatprep.subr.mxu0 0.0
        %1023 = vmatpush2.msra.mxu0 0.0
        %1024 = vmatprep.subr.mxu0 0.0
        %1025 = vmatpush2.msra.mxu0 0.0
        %1026 = vmatprep.subr.mxu0 0.0
        %1027 = vmatpush2.msra.mxu0 0.0
        %1028 = vmatprep.subr.mxu0 0.0
        %1029 = vmatpush2.msra.mxu0 0.0
        %1030 = vmatprep.subr.mxu0 0.0
        %1031 = vmatpush2.msra.mxu0 0.0
        %1032 = vmatprep.subr.mxu0 0.0
        %1033 = vmatpush2.msra.mxu0 0.0
        %1034 = vmatprep.subr.mxu0 0.0
        %1035 = vmatpush2.msra.mxu0 0.0
        %1036 = vmatprep.subr.mxu0 0.0
        %1037 = vmatpush2.msra.mxu0 0.0
        %1038 = vmatprep.subr.mxu0 0.0
        %1039 = vmatpush2.msra.mxu0 0.0
        %1040 = vmatprep.subr.mxu0 0.0
        %1041 = vmatpush2.msra.mxu0 0.0
        %1042 = vmatprep.subr.mxu0 0.0
        %1043 = vmatpush2.msra.mxu0 0.0
        %1044 = vmatprep.subr.mxu0 0.0
        %1045 = vmatpush2.msra.mxu0 0.0
        %1046 = vmatprep.subr.mxu0 0.0
        %1047 = vmatpush2.msra.mxu0 0.0
        %1048 = vmatprep.subr.mxu0 0.0
        %1049 = vmatpush2.msra.mxu0 0.0
        %1050 = vmatprep.mubr.f32.mxu0 0.0
        %1051 = vmatmul.mubr.f32.gmra.mxu0 %v949
        %v1052 = vpop.f32.mrf.mxu0
        %v1053 = vadd.f32 %v985, %v1052
        %v1054 = vpop.f32.mrf.mxu0
        %1055 = vmatprep.mubr.f32.mxu0 0.0
        %1056 = vmatmul.mubr.f32.gmra.mxu0 %v950
        %v1057 = vpop.f32.mrf.mxu0
        %v1058 = vadd.f32 %v985, %v1057
        %v1059 = vpop.f32.mrf.mxu0
        %1060 = vmatprep.mubr.f32.mxu0 0.0
        %1061 = vmatmul.mubr.f32.gmra.mxu0 %v951
        %v1062 = vpop.f32.mrf.mxu0
        %v1063 = vadd.f32 %v985, %v1062
        %v1064 = vpop.f32.mrf.mxu0
        %1065 = vmatprep.mubr.f32.mxu0 0.0
        %1066 = vmatmul.mubr.f32.gmra.mxu0 %v952
        %v1067 = vpop.f32.mrf.mxu0
        %v1068 = vadd.f32 %v985, %v1067
        %v1069 = vpop.f32.mrf.mxu0
        %1070 = vmatprep.mubr.f32.mxu0 0.0
        %1071 = vmatmul.mubr.f32.gmra.mxu0 %v953
        %v1072 = vpop.f32.mrf.mxu0
        %v1073 = vadd.f32 %v985, %v1072
        %v1074 = vpop.f32.mrf.mxu0
        %1075 = vmatprep.mubr.f32.mxu0 0.0
        %1076 = vmatmul.mubr.f32.gmra.mxu0 %v954
        %v1077 = vpop.f32.mrf.mxu0
        %v1078 = vadd.f32 %v985, %v1077
        %v1079 = vpop.f32.mrf.mxu0
        %1080 = vmatprep.mubr.f32.mxu0 0.0
        %1081 = vmatmul.mubr.f32.gmra.mxu0 %v955
        %v1082 = vpop.f32.mrf.mxu0
        %v1083 = vadd.f32 %v985, %v1082
        %v1084 = vpop.f32.mrf.mxu0
        %1085 = vmatprep.mubr.f32.mxu0 0.0
        %1086 = vmatmul.mubr.f32.gmra.mxu0 %v956
        %v1087 = vpop.f32.mrf.mxu0
        %v1088 = vadd.f32 %v985, %v1087
        %v1089 = vpop.f32.mrf.mxu0
        %1090 = vmatprep.mubr.f32.mxu0 0.0
        %1091 = vmatmul.mubr.f32.gmra.mxu0 %v957
        %v1092 = vpop.f32.mrf.mxu0
        %v1093 = vadd.f32 %v985, %v1092
        %v1094 = vpop.f32.mrf.mxu0
        %1095 = vmatprep.mubr.f32.mxu0 0.0
        %1096 = vmatmul.mubr.f32.gmra.mxu0 %v958
        %v1097 = vpop.f32.mrf.mxu0
        %v1098 = vadd.f32 %v985, %v1097
        %v1099 = vpop.f32.mrf.mxu0
        %1100 = vmatprep.mubr.f32.mxu0 0.0
        %1101 = vmatmul.mubr.f32.gmra.mxu0 %v959
        %v1102 = vpop.f32.mrf.mxu0
        %v1103 = vadd.f32 %v985, %v1102
        %v1104 = vpop.f32.mrf.mxu0
        %1105 = vmatprep.mubr.f32.mxu0 0.0
        %1106 = vmatmul.mubr.f32.gmra.mxu0 %v960
        %v1107 = vpop.f32.mrf.mxu0
        %v1108 = vadd.f32 %v985, %v1107
        %v1109 = vpop.f32.mrf.mxu0
        %1110 = vmatprep.mubr.f32.mxu0 0.0
        %1111 = vmatmul.mubr.f32.gmra.mxu0 %v961
        %v1112 = vpop.f32.mrf.mxu0
        %v1113 = vadd.f32 %v985, %v1112
        %v1114 = vpop.f32.mrf.mxu0
        %1115 = vmatprep.mubr.f32.mxu0 0.0
        %1116 = vmatmul.mubr.f32.gmra.mxu0 %v962
        %v1117 = vpop.f32.mrf.mxu0
        %v1118 = vadd.f32 %v985, %v1117
        %v1119 = vpop.f32.mrf.mxu0
        %1120 = vmatprep.mubr.f32.mxu0 0.0
        %1121 = vmatmul.mubr.f32.gmra.mxu0 %v963
        %v1122 = vpop.f32.mrf.mxu0
        %v1123 = vadd.f32 %v985, %v1122
        %v1124 = vpop.f32.mrf.mxu0
        %1125 = vmatprep.mubr.f32.mxu0 0.0
        %1126 = vmatmul.mubr.f32.gmra.mxu0 %v964
        %v1127 = vpop.f32.mrf.mxu0
        %v1128 = vadd.f32 %v985, %v1127
        %v1129 = vpop.f32.mrf.mxu0
        %1130 = vdwg.mxu0
        %v1131 = vmax.f32 %v1053, 0.0
        %v1132 = vmax.f32 %v1058, 0.0
        %v1133 = vmax.f32 %v1063, 0.0
        %v1134 = vmax.f32 %v1068, 0.0
        %v1135 = vmax.f32 %v1073, 0.0
        %v1136 = vmax.f32 %v1078, 0.0
        %v1137 = vmax.f32 %v1083, 0.0
        %v1138 = vmax.f32 %v1088, 0.0
        %v1139 = vmax.f32 %v1093, 0.0
        %v1140 = vmax.f32 %v1098, 0.0
        %v1141 = vmax.f32 %v1103, 0.0
        %v1142 = vmax.f32 %v1108, 0.0
        %v1143 = vmax.f32 %v1113, 0.0
        %v1144 = vmax.f32 %v1118, 0.0
        %v1145 = vmax.f32 %v1123, 0.0
        %v1146 = vmax.f32 %v1128, 0.0
        %s1147 = scalar_lea.vmem [#allocation2], 640
        %v1148 = vld [vmem:[%s1147] sm:$0xff]
        %v1149 = vld [vmem:[%s1147 + $0x8] sm:$0xff]
        %v1150 = vld [vmem:[%s1147 + $0x10] sm:$0xff]
        %v1151 = vld [vmem:[%s1147 + $0x18] sm:$0xff]
        %v1152 = vld [vmem:[%s1147 + $0x20] sm:$0xff]
        %v1153 = vld [vmem:[%s1147 + $0x28] sm:$0xff]
        %v1154 = vld [vmem:[%s1147 + $0x30] sm:$0xff]
        %v1155 = vld [vmem:[%s1147 + $0x38] sm:$0xff]
        %v1156 = vld [vmem:[%s1147 + $0x40] sm:$0xff]
        %v1157 = vld [vmem:[%s1147 + $0x48] sm:$0xff]
        %v1158 = vld [vmem:[%s1147 + $0x50] sm:$0xff]
        %v1159 = vld [vmem:[%s1147 + $0x58] sm:$0xff]
        %v1160 = vld [vmem:[%s1147 + $0x60] sm:$0xff]
        %v1161 = vld [vmem:[%s1147 + $0x68] sm:$0xff]
        %v1162 = vld [vmem:[%s1147 + $0x70] sm:$0xff]
        %v1163 = vld [vmem:[%s1147 + $0x78] sm:$0xff]
        %v1164 = vlaneseq
        %v1165 = vshrl.u32 %v1164, 7
        %v1166 = vsub.s32 5, %v1165
        %v1167 = vrot.slane %v203, %v1166
        %1168 = vmatprep.subr.mxu0 0.0
        %1169 = vmatpush1.msra.mxu0 %v1163
        %1170 = vmatprep.subr.mxu0 0.0
        %1171 = vmatpush1.msra.mxu0 %v1162
        %1172 = vmatprep.subr.mxu0 0.0
        %1173 = vmatpush1.msra.mxu0 %v1161
        %1174 = vmatprep.subr.mxu0 0.0
        %1175 = vmatpush1.msra.mxu0 %v1160
        %1176 = vmatprep.subr.mxu0 0.0
        %1177 = vmatpush1.msra.mxu0 %v1159
        %1178 = vmatprep.subr.mxu0 0.0
        %1179 = vmatpush1.msra.mxu0 %v1158
        %1180 = vmatprep.subr.mxu0 0.0
        %1181 = vmatpush1.msra.mxu0 %v1157
        %1182 = vmatprep.subr.mxu0 0.0
        %1183 = vmatpush1.msra.mxu0 %v1156
        %1184 = vmatprep.subr.mxu0 0.0
        %1185 = vmatpush1.msra.mxu0 %v1155
        %1186 = vmatprep.subr.mxu0 0.0
        %1187 = vmatpush1.msra.mxu0 %v1154
        %1188 = vmatprep.subr.mxu0 0.0
        %1189 = vmatpush1.msra.mxu0 %v1153
        %1190 = vmatprep.subr.mxu0 0.0
        %1191 = vmatpush1.msra.mxu0 %v1152
        %1192 = vmatprep.subr.mxu0 0.0
        %1193 = vmatpush1.msra.mxu0 %v1151
        %1194 = vmatprep.subr.mxu0 0.0
        %1195 = vmatpush1.msra.mxu0 %v1150
        %1196 = vmatprep.subr.mxu0 0.0
        %1197 = vmatpush1.msra.mxu0 %v1149
        %1198 = vmatprep.subr.mxu0 0.0
        %1199 = vmatpush1.msra.mxu0 %v1148
        %1200 = vmatprep.subr.mxu0 0.0
        %1201 = vmatpush2.msra.mxu0 0.0
        %1202 = vmatprep.subr.mxu0 0.0
        %1203 = vmatpush2.msra.mxu0 0.0
        %1204 = vmatprep.subr.mxu0 0.0
        %1205 = vmatpush2.msra.mxu0 0.0
        %1206 = vmatprep.subr.mxu0 0.0
        %1207 = vmatpush2.msra.mxu0 0.0
        %1208 = vmatprep.subr.mxu0 0.0
        %1209 = vmatpush2.msra.mxu0 0.0
        %1210 = vmatprep.subr.mxu0 0.0
        %1211 = vmatpush2.msra.mxu0 0.0
        %1212 = vmatprep.subr.mxu0 0.0
        %1213 = vmatpush2.msra.mxu0 0.0
        %1214 = vmatprep.subr.mxu0 0.0
        %1215 = vmatpush2.msra.mxu0 0.0
        %1216 = vmatprep.subr.mxu0 0.0
        %1217 = vmatpush2.msra.mxu0 0.0
        %1218 = vmatprep.subr.mxu0 0.0
        %1219 = vmatpush2.msra.mxu0 0.0
        %1220 = vmatprep.subr.mxu0 0.0
        %1221 = vmatpush2.msra.mxu0 0.0
        %1222 = vmatprep.subr.mxu0 0.0
        %1223 = vmatpush2.msra.mxu0 0.0
        %1224 = vmatprep.subr.mxu0 0.0
        %1225 = vmatpush2.msra.mxu0 0.0
        %1226 = vmatprep.subr.mxu0 0.0
        %1227 = vmatpush2.msra.mxu0 0.0
        %1228 = vmatprep.subr.mxu0 0.0
        %1229 = vmatpush2.msra.mxu0 0.0
        %1230 = vmatprep.subr.mxu0 0.0
        %1231 = vmatpush2.msra.mxu0 0.0
        %1232 = vmatprep.mubr.f32.mxu0 0.0
        %1233 = vmatmul.mubr.f32.gmra.mxu0 %v1131
        %v1234 = vpop.f32.mrf.mxu0
        %v1235 = vadd.f32 %v1167, %v1234
        %v1236 = vpop.f32.mrf.mxu0
        %1237 = vmatprep.mubr.f32.mxu0 0.0
        %1238 = vmatmul.mubr.f32.gmra.mxu0 %v1132
        %v1239 = vpop.f32.mrf.mxu0
        %v1240 = vadd.f32 %v1167, %v1239
        %v1241 = vpop.f32.mrf.mxu0
        %1242 = vmatprep.mubr.f32.mxu0 0.0
        %1243 = vmatmul.mubr.f32.gmra.mxu0 %v1133
        %v1244 = vpop.f32.mrf.mxu0
        %v1245 = vadd.f32 %v1167, %v1244
        %v1246 = vpop.f32.mrf.mxu0
        %1247 = vmatprep.mubr.f32.mxu0 0.0
        %1248 = vmatmul.mubr.f32.gmra.mxu0 %v1134
        %v1249 = vpop.f32.mrf.mxu0
        %v1250 = vadd.f32 %v1167, %v1249
        %v1251 = vpop.f32.mrf.mxu0
        %1252 = vmatprep.mubr.f32.mxu0 0.0
        %1253 = vmatmul.mubr.f32.gmra.mxu0 %v1135
        %v1254 = vpop.f32.mrf.mxu0
        %v1255 = vadd.f32 %v1167, %v1254
        %v1256 = vpop.f32.mrf.mxu0
        %1257 = vmatprep.mubr.f32.mxu0 0.0
        %1258 = vmatmul.mubr.f32.gmra.mxu0 %v1136
        %v1259 = vpop.f32.mrf.mxu0
        %v1260 = vadd.f32 %v1167, %v1259
        %v1261 = vpop.f32.mrf.mxu0
        %1262 = vmatprep.mubr.f32.mxu0 0.0
        %1263 = vmatmul.mubr.f32.gmra.mxu0 %v1137
        %v1264 = vpop.f32.mrf.mxu0
        %v1265 = vadd.f32 %v1167, %v1264
        %v1266 = vpop.f32.mrf.mxu0
        %1267 = vmatprep.mubr.f32.mxu0 0.0
        %1268 = vmatmul.mubr.f32.gmra.mxu0 %v1138
        %v1269 = vpop.f32.mrf.mxu0
        %v1270 = vadd.f32 %v1167, %v1269
        %v1271 = vpop.f32.mrf.mxu0
        %1272 = vmatprep.mubr.f32.mxu0 0.0
        %1273 = vmatmul.mubr.f32.gmra.mxu0 %v1139
        %v1274 = vpop.f32.mrf.mxu0
        %v1275 = vadd.f32 %v1167, %v1274
        %v1276 = vpop.f32.mrf.mxu0
        %1277 = vmatprep.mubr.f32.mxu0 0.0
        %1278 = vmatmul.mubr.f32.gmra.mxu0 %v1140
        %v1279 = vpop.f32.mrf.mxu0
        %v1280 = vadd.f32 %v1167, %v1279
        %v1281 = vpop.f32.mrf.mxu0
        %1282 = vmatprep.mubr.f32.mxu0 0.0
        %1283 = vmatmul.mubr.f32.gmra.mxu0 %v1141
        %v1284 = vpop.f32.mrf.mxu0
        %v1285 = vadd.f32 %v1167, %v1284
        %v1286 = vpop.f32.mrf.mxu0
        %1287 = vmatprep.mubr.f32.mxu0 0.0
        %1288 = vmatmul.mubr.f32.gmra.mxu0 %v1142
        %v1289 = vpop.f32.mrf.mxu0
        %v1290 = vadd.f32 %v1167, %v1289
        %v1291 = vpop.f32.mrf.mxu0
        %1292 = vmatprep.mubr.f32.mxu0 0.0
        %1293 = vmatmul.mubr.f32.gmra.mxu0 %v1143
        %v1294 = vpop.f32.mrf.mxu0
        %v1295 = vadd.f32 %v1167, %v1294
        %v1296 = vpop.f32.mrf.mxu0
        %1297 = vmatprep.mubr.f32.mxu0 0.0
        %1298 = vmatmul.mubr.f32.gmra.mxu0 %v1144
        %v1299 = vpop.f32.mrf.mxu0
        %v1300 = vadd.f32 %v1167, %v1299
        %v1301 = vpop.f32.mrf.mxu0
        %1302 = vmatprep.mubr.f32.mxu0 0.0
        %1303 = vmatmul.mubr.f32.gmra.mxu0 %v1145
        %v1304 = vpop.f32.mrf.mxu0
        %v1305 = vadd.f32 %v1167, %v1304
        %v1306 = vpop.f32.mrf.mxu0
        %1307 = vmatprep.mubr.f32.mxu0 0.0
        %1308 = vmatmul.mubr.f32.gmra.mxu0 %v1146
        %v1309 = vpop.f32.mrf.mxu0
        %v1310 = vadd.f32 %v1167, %v1309
        %v1311 = vpop.f32.mrf.mxu0
        %1312 = vdwg.mxu0
        %v1313 = vmax.f32 %v1235, 0.0
        %v1314 = vmax.f32 %v1240, 0.0
        %v1315 = vmax.f32 %v1245, 0.0
        %v1316 = vmax.f32 %v1250, 0.0
        %v1317 = vmax.f32 %v1255, 0.0
        %v1318 = vmax.f32 %v1260, 0.0
        %v1319 = vmax.f32 %v1265, 0.0
        %v1320 = vmax.f32 %v1270, 0.0
        %v1321 = vmax.f32 %v1275, 0.0
        %v1322 = vmax.f32 %v1280, 0.0
        %v1323 = vmax.f32 %v1285, 0.0
        %v1324 = vmax.f32 %v1290, 0.0
        %v1325 = vmax.f32 %v1295, 0.0
        %v1326 = vmax.f32 %v1300, 0.0
        %v1327 = vmax.f32 %v1305, 0.0
        %v1328 = vmax.f32 %v1310, 0.0
        %1329 = vst [vmem:[%s179] sm:$0xff] %v1313
        %1330 = vst [vmem:[%s179 + $0x8] sm:$0xff] %v1314
        %1331 = vst [vmem:[%s179 + $0x10] sm:$0xff] %v1315
        %1332 = vst [vmem:[%s179 + $0x18] sm:$0xff] %v1316
        %1333 = vst [vmem:[%s179 + $0x20] sm:$0xff] %v1317
        %1334 = vst [vmem:[%s179 + $0x28] sm:$0xff] %v1318
        %1335 = vst [vmem:[%s179 + $0x30] sm:$0xff] %v1319
        %1336 = vst [vmem:[%s179 + $0x38] sm:$0xff] %v1320
        %1337 = vst [vmem:[%s179 + $0x40] sm:$0xff] %v1321
        %1338 = vst [vmem:[%s179 + $0x48] sm:$0xff] %v1322
        %1339 = vst [vmem:[%s179 + $0x50] sm:$0xff] %v1323
        %1340 = vst [vmem:[%s179 + $0x58] sm:$0xff] %v1324
        %1341 = vst [vmem:[%s179 + $0x60] sm:$0xff] %v1325
        %1342 = vst [vmem:[%s179 + $0x68] sm:$0xff] %v1326
        %1343 = vst [vmem:[%s179 + $0x70] sm:$0xff] %v1327
        %1344 = vst [vmem:[%s179 + $0x78] sm:$0xff] %v1328
        %s1345 = sand.u32 %s94, 1
        %s1346 = scalar_lea.sflag [#allocation4], %s1345
        %s1347 = sand.u32 %s94, 1
        %s1348 = smul.addr %s1347, 128
        %s1349 = scalar_lea.vmem [#allocation5], %s1348
        // Predicated region
        $region37: #{tpu_custom_call.1} parent=31 // pred_check
          %p1350 = pneg %p104
        $region38: #{tpu_custom_call.1} parent=31 // pred_check_branch
          %1352 = sbr.rel (%p1350) target = $region40
        $region39: #{tpu_custom_call.1} parent=31 // pred_region
          %s1353 = smul.u32 16, %s18
          %s1355 = ssub.s32 2048, 2048
          %1356 = vsyncadd %s1346, %s1355
          %s1357 = smul.addr %s1353, 128
          %s1358 = scalar_lea.hbm %s3, %s1357
          %s1359 = sshll.u32 %s1349, 4
          %s1360 = int_to_ptr.vmem [resolvable:$true] %s1359
          %1365 = dma.vmem_to_hbm [thread:$0]  %s1360, 2048, %s1358, %s1346, 128, 128, 8
        $region40: #{tpu_custom_call.1} parent=31 // pred_fallthru
          _
      $region32: #{tpu_custom_call.1} parent=5 // pred_fallthru
        _
      %p1366 = scmp.le.s32.totalorder 2, %s13
      // Predicated region
      $region41: #{tpu_custom_call.1} parent=5 // pred_check
        %p1367 = pneg %p1366
      $region42: #{tpu_custom_call.1} parent=5 // pred_check_branch
        %1369 = sbr.rel (%p1367) target = $region44
      $region43: #{tpu_custom_call.1} parent=5 // pred_region
        %s1370 = ssub.s32 %s13, 2
        // Predicated region
        $region45: #{tpu_custom_call.1} parent=43 // pred_check
          %p1371 = pneg %p110
        $region46: #{tpu_custom_call.1} parent=43 // pred_check_branch
          %1373 = sbr.rel (%p1371) target = $region48
        $region47: #{tpu_custom_call.1} parent=43 // pred_region
          %s1374 = sand.u32 %s95, 1
          %s1375 = scalar_lea.sflag [#allocation4], %s1374
          %s1376 = sand.u32 %s95, 1
          %s1377 = smul.addr %s1376, 128
          %s1378 = scalar_lea.vmem [#allocation5], %s1377
          %1379 = dma.done %s1375, 2048
        $region48: #{tpu_custom_call.1} parent=43 // pred_fallthru
          _
      $region44: #{tpu_custom_call.1} parent=5 // pred_fallthru
        _
    $region6: #{tpu_custom_call.1} parent=1 // loop_footer
      %s17 = sadd.s32 1, %s13
    $region7: #{tpu_custom_call.1} parent=1 // loop_footer_branch
      %12 = sbr.rel target = $region3
    $region8: #{tpu_custom_call.1} parent=1 // loop_exit
      _
    %1380 = vsyncpa [#allocation3], 1
    %s1381 = scalar_lea.sflag [#allocation3], 1
    %1382 = vsyncpa %s1381, 1
    %1383 = vsyncpa [#allocation4], 1
    %s1384 = scalar_lea.sflag [#allocation4], 1
    %1385 = vsyncpa %s1384, 1

</llo_original>
